<compile_context>
chip_gen: v7x
topology: tpu7x:2x2x1
jax: 0.10.0
libtpu: 0.0.40
codegen_flags: <defaults>
</compile_context>

<pallas_src>
import functools

import jax
import jax.numpy as jnp
from jax.experimental import pallas as pl
from jax.experimental.pallas import tpu as pltpu

_BN_EPS = 1e-5


def _round_up(x, m):
    return (x + m - 1) // m * m


# ---------------------------------------------------------------------------
# Kernel
# ---------------------------------------------------------------------------
def _dnn_fused_kernel(x_ref, w1_ref, w2_ref, w3_ref, w4_ref, bias_ref, out_ref):
    # x_ref:    (2*D, TB)                 compute dtype, batch on lanes
    # wl_ref:   (2*Hl_pad, 2*H(l-1)_pad)  compute dtype, block-diag [user; item]
    # bias_ref: (max_width, 4)            f32, column l = fused (bias+BN) of layer l
    # out_ref:  (1, TB)                   f32 logits row for this batch tile
    h = x_ref[...]
    w_refs = (w1_ref, w2_ref, w3_ref, w4_ref)
    acc = None
    for l, w_ref in enumerate(w_refs):
        w = w_ref[...]
        out_w = w.shape[0]
        b = bias_ref[:out_w, l:l + 1]                                # (out_w, 1) f32
        acc = jnp.dot(w, h, preferred_element_type=jnp.float32) + b  # MXU, f32 acc
        acc = jnp.maximum(acc, 0.0)                                  # fused bias+BN+ReLU
        if l + 1 < len(w_refs):
            h = acc.astype(w.dtype)                                  # bf16 feed to next MXU pass
    half = acc.shape[0] // 2                                         # user / item halves
    u = acc[:half, :]
    i = acc[half:, :]
    # logits[b] = sum_k u[k, b] * i[k, b]  -> lane-dense (1, TB) row store
    out_ref[...] = jnp.sum(u * i, axis=0, keepdims=True)


# ---------------------------------------------------------------------------
# Parameter construction (mirrors the PyTorch module)
# ---------------------------------------------------------------------------
def _linear_init(key, fan_in, fan_out):
    """Stand-in for nn.Linear default init; weight stored as (out, in)."""
    kw, kb = jax.random.split(key)
    bound = 1.0 / jnp.sqrt(jnp.float32(fan_in))
    w = jax.random.uniform(kw, (fan_out, fan_in), jnp.float32, -bound, bound)
    b = jax.random.uniform(kb, (fan_out,), jnp.float32, -bound, bound)
    return w, b


def make_dnn_params(key, num_users, num_items, latent_dim, hidden_units):
    ks = jax.random.split(key, 3)
    params = {
        "emb_user": jax.random.normal(ks[0], (num_users, latent_dim), jnp.float32),
        "emb_item": jax.random.normal(ks[1], (num_items, latent_dim), jnp.float32),
    }

    def tower(key):
        dims = [latent_dim] + list(hidden_units)
        n = len(hidden_units)
        kk = jax.random.split(key, 4 * n)
        layers = []
        for lvl in range(n):
            w, b = _linear_init(kk[4 * lvl], dims[lvl], dims[lvl + 1])
            layer = {"w": w, "b": b}
            if lvl < n - 1:  # fc1..fc3 carry BatchNorm1d; fc4 is fc+relu only
                hdim = dims[lvl + 1]
                layer["gamma"] = 1.0 + 0.1 * jax.random.normal(kk[4 * lvl + 1], (hdim,), jnp.float32)
                layer["beta"] = 0.1 * jax.random.normal(kk[4 * lvl + 2], (hdim,), jnp.float32)
                layer["mean"] = 0.1 * jax.random.normal(kk[4 * lvl + 3], (hdim,), jnp.float32)
                layer["var"] = 0.9 * jnp.ones((hdim,), jnp.float32)
            layers.append(layer)
        return layers

    ku, ki = jax.random.split(ks[2])
    params["u_layers"] = tower(ku)
    params["i_layers"] = tower(ki)
    return params


# ---------------------------------------------------------------------------
# Wrapper-side packing: fold BN+bias, fuse towers block-diagonally, pad to 128
# ---------------------------------------------------------------------------
def _fold_layer(layer):
    """Fold eval-mode BatchNorm1d (if present) into (W, b); W stays (out, in)."""
    w, b = layer["w"], layer["b"]
    if "gamma" in layer:
        scale = layer["gamma"] / jnp.sqrt(layer["var"] + _BN_EPS)
        shift = layer["beta"] - layer["mean"] * scale
        w = w * scale[:, None]
        b = b * scale + shift
    return w, b


def _pad2(w, rows, cols):
    return jnp.zeros((rows, cols), w.dtype).at[: w.shape[0], : w.shape[1]].set(w)


def pack_dnn_params(params, compute_dtype=jnp.bfloat16):
    u_layers, i_layers = params["u_layers"], params["i_layers"]
    n_layers = len(u_layers)
    in_u = u_layers[0]["w"].shape[1]
    in_i = i_layers[0]["w"].shape[1]
    fused_w, fused_b = [], []
    for l in range(n_layers):
        uw, ub = _fold_layer(u_layers[l])
        iw, ib = _fold_layer(i_layers[l])
        out_u = _round_up(uw.shape[0], 128)
        out_i = _round_up(iw.shape[0], 128)
        uwp = _pad2(uw, out_u, in_u)
        iwp = _pad2(iw, out_i, in_i)
        top = jnp.concatenate([uwp, jnp.zeros((out_u, in_i), jnp.float32)], axis=1)
        bot = jnp.concatenate([jnp.zeros((out_i, in_u), jnp.float32), iwp], axis=1)
        fused_w.append(jnp.concatenate([top, bot], axis=0).astype(compute_dtype))
        ubp = jnp.zeros((out_u,), jnp.float32).at[: ub.shape[0]].set(ub)
        ibp = jnp.zeros((out_i,), jnp.float32).at[: ib.shape[0]].set(ib)
        fused_b.append(jnp.concatenate([ubp, ibp]))
        in_u, in_i = out_u, out_i
    max_w = max(b.shape[0] for b in fused_b)
    bias = jnp.zeros((max_w, n_layers), jnp.float32)
    for l, bf in enumerate(fused_b):
        bias = bias.at[: bf.shape[0], l].set(bf)
    return {
        "emb_user": params["emb_user"],
        "emb_item": params["emb_item"],
        "w": tuple(fused_w),
        "bias": bias,
    }


def _default_batch_tile():
    """Generation-aware batch tile (v7x has 64 MiB VMEM vs 128 MiB on v5e/v6e)."""
    try:
        kind = jax.devices()[0].device_kind.lower()
    except Exception:
        return 1024
    if "v6" in kind:
        return 4096
    if "v7" in kind:
        return 2048
    return 2048  # v5e & others


# ---------------------------------------------------------------------------
# Forward pass
# ---------------------------------------------------------------------------
@functools.partial(jax.jit, static_argnames=("batch_tile",))
def dnn_forward(packed, user_indices, item_indices, batch_tile=None):
    w1, w2, w3, w4 = packed["w"]
    bias = packed["bias"]
    compute_dtype = w1.dtype

    # Embedding gather + tower-input concat (glue, plain JAX).
    # TODO(synk): fuse the embedding-row gather into the kernel via scalar
    # prefetch + per-row DMA from the HBM tables to avoid this (B, 2D) round trip.
    u_emb = packed["emb_user"][user_indices]
    i_emb = packed["emb_item"][item_indices]
    x = jnp.concatenate([u_emb, i_emb], axis=1)                 # (B, 2D)
    B = x.shape[0]

    tb = batch_tile if batch_tile is not None else _default_batch_tile()
    tb = min(tb, _round_up(B, 128))
    b_pad = _round_up(B, tb)
    x = jnp.pad(x, ((0, b_pad - B), (0, 0)))
    x_t = x.T.astype(compute_dtype)                             # (2D, B_pad), batch on lanes
    two_d = x_t.shape[0]

    out = pl.pallas_call(
        _dnn_fused_kernel,
        out_shape=jax.ShapeDtypeStruct((1, b_pad), jnp.float32),
        grid=(b_pad // tb,),
        in_specs=[
            pl.BlockSpec((two_d, tb), lambda b: (0, b)),        # streamed batch tiles
            pl.BlockSpec(w1.shape, lambda b: (0, 0)),           # weights resident across grid
            pl.BlockSpec(w2.shape, lambda b: (0, 0)),
            pl.BlockSpec(w3.shape, lambda b: (0, 0)),
            pl.BlockSpec(w4.shape, lambda b: (0, 0)),
            pl.BlockSpec(bias.shape, lambda b: (0, 0)),
        ],
        out_specs=pl.BlockSpec((1, tb), lambda b: (0, b)),      # lane-dense logits row
        compiler_params=pltpu.CompilerParams(
            dimension_semantics=("parallel",),
            vmem_limit_bytes=48 * 1024 * 1024,
        ),
    )(x_t, w1, w2, w3, w4, bias)
    return out[0, :B].reshape(B, 1)                             # == logits.view(-1, 1)


# ---------------------------------------------------------------------------
# Pure-JAX reference (mirrors the PyTorch module, eval mode)
# ---------------------------------------------------------------------------
def _reference_forward(params, user_indices, item_indices):
    def tower(x, layers):
        h = x
        for layer in layers:
            h = h @ layer["w"].T + layer["b"]
            if "gamma" in layer:
                h = (h - layer["mean"]) / jnp.sqrt(layer["var"] + _BN_EPS) \
                    * layer["gamma"] + layer["beta"]
            h = jnp.maximum(h, 0.0)
        return h

    u = tower(params["emb_user"][user_indices], params["u_layers"])
    i = tower(params["emb_item"][item_indices], params["i_layers"])
    return jnp.sum(u * i, axis=1, keepdims=True)


if __name__ == "__main__":
    num_users, num_items = 32, 48
    latent_dim = 32
    hidden_units = [32, 32, 32, 32]
    batch = 8

    key = jax.random.PRNGKey(0)
    kp, ku, ki = jax.random.split(key, 3)
    params = make_dnn_params(kp, num_users, num_items, latent_dim, hidden_units)
    user_indices = jax.random.randint(ku, (batch,), 0, num_users, dtype=jnp.int32)
    item_indices = jax.random.randint(ki, (batch,), 0, num_items, dtype=jnp.int32)

    ref = _reference_forward(params, user_indices, item_indices)

    # f32 path: must match the module's eval() forward tightly.
    packed_f32 = pack_dnn_params(params, compute_dtype=jnp.float32)
    out_f32 = jax.block_until_ready(dnn_forward(packed_f32, user_indices, item_indices))
    assert out_f32.shape == (batch, 1)
    assert jnp.allclose(out_f32, ref, atol=5e-4, rtol=5e-4), (out_f32, ref)

    # bf16 fast path (v6e/v7x MXU): same math in reduced precision.
    packed_bf16 = pack_dnn_params(params, compute_dtype=jnp.bfloat16)
    out_bf16 = jax.block_until_ready(dnn_forward(packed_bf16, user_indices, item_indices))
    assert out_bf16.shape == (batch, 1)
    assert jnp.allclose(out_bf16, ref, atol=5e-2, rtol=5e-2), (out_bf16, ref)

    # TODO(synk): training-mode branch (group softmax over num_class) and the
    # in-kernel embedding gather (scalar prefetch + manual DMA) are not implemented.
    print("KERNEL_OK")
</pallas_src>

<mosaic_0001>
module attributes {stable_mosaic.version = 11 : i64} {
  func.func @_dnn_fused_kernel(%arg0: i32, %arg1: memref<64x128xf32, #tpu.memory_space<vmem>>, %arg2: memref<256x64xf32, #tpu.memory_space<vmem>>, %arg3: memref<256x256xf32, #tpu.memory_space<vmem>>, %arg4: memref<256x256xf32, #tpu.memory_space<vmem>>, %arg5: memref<256x256xf32, #tpu.memory_space<vmem>>, %arg6: memref<256x4xf32, #tpu.memory_space<vmem>>, %arg7: memref<1x128xf32, #tpu.memory_space<vmem>>) attributes {dimension_semantics = [#tpu.dimension_semantics<parallel>], iteration_bounds = array<i64: 1>, scalar_prefetch = 0 : i64, scratch_operands = 0 : i64, tpu.core_type = #tpu.core_type<tc>, window_params = [{transform_indices = @transform_0, window_bounds = array<i64: 64, 128>}, {pipeline_mode = #tpu.pipeline_mode<synchronous>, transform_indices = @transform_1, window_bounds = array<i64: 256, 64>}, {pipeline_mode = #tpu.pipeline_mode<synchronous>, transform_indices = @transform_2, window_bounds = array<i64: 256, 256>}, {pipeline_mode = #tpu.pipeline_mode<synchronous>, transform_indices = @transform_3, window_bounds = array<i64: 256, 256>}, {pipeline_mode = #tpu.pipeline_mode<synchronous>, transform_indices = @transform_4, window_bounds = array<i64: 256, 256>}, {pipeline_mode = #tpu.pipeline_mode<synchronous>, transform_indices = @transform_5, window_bounds = array<i64: 256, 4>}, {transform_indices = @transform_6, window_bounds = array<i64: 1, 128>}]} {
    %c0 = arith.constant 0 : index
    %c0_0 = arith.constant 0 : index
    %0 = vector.load %arg1[%c0, %c0_0] : memref<64x128xf32, #tpu.memory_space<vmem>>, vector<64x128xf32>
    %c0_1 = arith.constant 0 : index
    %c0_2 = arith.constant 0 : index
    %1 = vector.load %arg2[%c0_1, %c0_2] : memref<256x64xf32, #tpu.memory_space<vmem>>, vector<256x64xf32>
    %c0_3 = arith.constant 0 : index
    %c0_4 = arith.constant 0 : index
    %2 = vector.load %arg6[%c0_3, %c0_4] : memref<256x4xf32, #tpu.memory_space<vmem>>, vector<256x1xf32>
    %cst = arith.constant dense<0.000000e+00> : vector<256x128xf32>
    %3 = tpu.matmul %1, %0, %cst {dimension_numbers = #tpu.dot_dimension_numbers<[1], [0], [0], [1], [0, 0, 1, 1], [], []>} : vector<256x64xf32>, vector<64x128xf32>, vector<256x128xf32> -> vector<256x128xf32>
    %4 = vector.broadcast %2 : vector<256x1xf32> to vector<256x128xf32>
    %5 = arith.addf %3, %4 : vector<256x128xf32>
    %cst_5 = arith.constant 0.000000e+00 : f32
    %6 = vector.broadcast %cst_5 : f32 to vector<256x128xf32>
    %7 = arith.maximumf %5, %6 : vector<256x128xf32>
    %c0_6 = arith.constant 0 : index
    %c0_7 = arith.constant 0 : index
    %8 = vector.load %arg3[%c0_6, %c0_7] : memref<256x256xf32, #tpu.memory_space<vmem>>, vector<256x256xf32>
    %c0_8 = arith.constant 0 : index
    %c1 = arith.constant 1 : index
    %9 = vector.load %arg6[%c0_8, %c1] : memref<256x4xf32, #tpu.memory_space<vmem>>, vector<256x1xf32>
    %cst_9 = arith.constant dense<0.000000e+00> : vector<256x128xf32>
    %10 = tpu.matmul %8, %7, %cst_9 {dimension_numbers = #tpu.dot_dimension_numbers<[1], [0], [0], [1], [0, 0, 1, 1], [], []>} : vector<256x256xf32>, vector<256x128xf32>, vector<256x128xf32> -> vector<256x128xf32>
    %11 = vector.broadcast %9 : vector<256x1xf32> to vector<256x128xf32>
    %12 = arith.addf %10, %11 : vector<256x128xf32>
    %cst_10 = arith.constant 0.000000e+00 : f32
    %13 = vector.broadcast %cst_10 : f32 to vector<256x128xf32>
    %14 = arith.maximumf %12, %13 : vector<256x128xf32>
    %c0_11 = arith.constant 0 : index
    %c0_12 = arith.constant 0 : index
    %15 = vector.load %arg4[%c0_11, %c0_12] : memref<256x256xf32, #tpu.memory_space<vmem>>, vector<256x256xf32>
    %c0_13 = arith.constant 0 : index
    %c2 = arith.constant 2 : index
    %16 = vector.load %arg6[%c0_13, %c2] : memref<256x4xf32, #tpu.memory_space<vmem>>, vector<256x1xf32>
    %cst_14 = arith.constant dense<0.000000e+00> : vector<256x128xf32>
    %17 = tpu.matmul %15, %14, %cst_14 {dimension_numbers = #tpu.dot_dimension_numbers<[1], [0], [0], [1], [0, 0, 1, 1], [], []>} : vector<256x256xf32>, vector<256x128xf32>, vector<256x128xf32> -> vector<256x128xf32>
    %18 = vector.broadcast %16 : vector<256x1xf32> to vector<256x128xf32>
    %19 = arith.addf %17, %18 : vector<256x128xf32>
    %cst_15 = arith.constant 0.000000e+00 : f32
    %20 = vector.broadcast %cst_15 : f32 to vector<256x128xf32>
    %21 = arith.maximumf %19, %20 : vector<256x128xf32>
    %c0_16 = arith.constant 0 : index
    %c0_17 = arith.constant 0 : index
    %22 = vector.load %arg5[%c0_16, %c0_17] : memref<256x256xf32, #tpu.memory_space<vmem>>, vector<256x256xf32>
    %c0_18 = arith.constant 0 : index
    %c3 = arith.constant 3 : index
    %23 = vector.load %arg6[%c0_18, %c3] : memref<256x4xf32, #tpu.memory_space<vmem>>, vector<256x1xf32>
    %cst_19 = arith.constant dense<0.000000e+00> : vector<256x128xf32>
    %24 = tpu.matmul %22, %21, %cst_19 {dimension_numbers = #tpu.dot_dimension_numbers<[1], [0], [0], [1], [0, 0, 1, 1], [], []>} : vector<256x256xf32>, vector<256x128xf32>, vector<256x128xf32> -> vector<256x128xf32>
    %25 = vector.broadcast %23 : vector<256x1xf32> to vector<256x128xf32>
    %26 = arith.addf %24, %25 : vector<256x128xf32>
    %cst_20 = arith.constant 0.000000e+00 : f32
    %27 = vector.broadcast %cst_20 : f32 to vector<256x128xf32>
    %28 = arith.maximumf %26, %27 : vector<256x128xf32>
    %29 = vector.extract_strided_slice %28 {offsets = [0, 0], sizes = [128, 128], strides = [1, 1]} : vector<256x128xf32> to vector<128x128xf32>
    %30 = vector.extract_strided_slice %28 {offsets = [128, 0], sizes = [128, 128], strides = [1, 1]} : vector<256x128xf32> to vector<128x128xf32>
    %31 = arith.mulf %29, %30 : vector<128x128xf32>
    %cst_21 = arith.constant dense<0.000000e+00> : vector<128xf32>
    %32 = vector.multi_reduction <add>, %31, %cst_21 [0] : vector<128x128xf32> to vector<128xf32>
    %33 = vector.shape_cast %32 : vector<128xf32> to vector<1x128xf32>
    %c0_22 = arith.constant 0 : index
    %c0_23 = arith.constant 0 : index
    %34 = vector.load %arg7[%c0_22, %c0_23] : memref<1x128xf32, #tpu.memory_space<vmem>>, vector<1x128xf32>
    tpu.vector_store %arg7[%c0_22, %c0_23], %33 {strides = array<i32>} : memref<1x128xf32, #tpu.memory_space<vmem>>, vector<1x128xf32>,
    return
  }
  func.func @transform_0(%arg0: i32) -> (i32, i32) {
    %c0_i32 = arith.constant 0 : i32
    %c0_i32_0 = arith.constant 0 : i32
    return %c0_i32, %arg0 : i32, i32
  }
  func.func @transform_1(%arg0: i32) -> (i32, i32) {
    %c0_i32 = arith.constant 0 : i32
    %c0_i32_0 = arith.constant 0 : i32
    %c0_i32_1 = arith.constant 0 : i32
    return %c0_i32, %c0_i32_0 : i32, i32
  }
  func.func @transform_2(%arg0: i32) -> (i32, i32) {
    %c0_i32 = arith.constant 0 : i32
    %c0_i32_0 = arith.constant 0 : i32
    %c0_i32_1 = arith.constant 0 : i32
    return %c0_i32, %c0_i32_0 : i32, i32
  }
  func.func @transform_3(%arg0: i32) -> (i32, i32) {
    %c0_i32 = arith.constant 0 : i32
    %c0_i32_0 = arith.constant 0 : i32
    %c0_i32_1 = arith.constant 0 : i32
    return %c0_i32, %c0_i32_0 : i32, i32
  }
  func.func @transform_4(%arg0: i32) -> (i32, i32) {
    %c0_i32 = arith.constant 0 : i32
    %c0_i32_0 = arith.constant 0 : i32
    %c0_i32_1 = arith.constant 0 : i32
    return %c0_i32, %c0_i32_0 : i32, i32
  }
  func.func @transform_5(%arg0: i32) -> (i32, i32) {
    %c0_i32 = arith.constant 0 : i32
    %c0_i32_0 = arith.constant 0 : i32
    %c0_i32_1 = arith.constant 0 : i32
    return %c0_i32, %c0_i32_0 : i32, i32
  }
  func.func @transform_6(%arg0: i32) -> (i32, i32) {
    %c0_i32 = arith.constant 0 : i32
    %c0_i32_0 = arith.constant 0 : i32
    return %c0_i32, %arg0 : i32, i32
  }
}

</mosaic_0001>

<llo_original>
// kernel: dnn_forward.1
$region0: #{dnn_forward.1}
  #allocation0 [shape = 'u32[]', space=smem, size = 0x4, offset = 0x4, fixed_abs, tag = 'smem constant byte address 0x4 - core index']
  #allocation1 [shape = 'u32[144,128]{1,0:T(1,128)}', space=vmem, size = 0x12000, scoped, tag = 'internal scratch']
  %s0 = inlined_call_operand.vmem [shape: f32[64,128], index: 0, kind: input, shape index: {}]
  %s1 = inlined_call_operand.vmem [shape: f32[256,64], index: 1, kind: input, shape index: {}]
  %s2 = inlined_call_operand.vmem [shape: f32[256,256], index: 2, kind: input, shape index: {}]
  %s3 = inlined_call_operand.vmem [shape: f32[256,256], index: 3, kind: input, shape index: {}]
  %s4 = inlined_call_operand.hbm [shape: f32[256,256], index: 4, kind: input, shape index: {}]
  %s5 = inlined_call_operand.vmem [shape: f32[256,4], index: 5, kind: input, shape index: {}]
  %s6 = inlined_call_operand.vmem [shape: f32[1,128], index: 6, kind: output, shape index: {}]
  %s7 = sld [smem:[#allocation0]]
  $region38: #{dnn_forward.1} parent=0
    _
  %s9 = ssub.s32 1, %s7
  %s10 = scalar_select 0, %s9, %s7
  $region1: #{dnn_forward.1} parent=0
    #allocation2 [shape = 'u8[262144]{0}', space=vmem, size = 0x40000, scoped, tag = 'input window, operand 4, single buffered']
    #allocation3 [shape = 's32[1]{0}', space=sflag, size = 0x4, scoped, tag = 'scoped memory for dnn_forward.1']
    %11 = vsyncpa [#allocation3], 0
    // Predicated region
    $region2: #{dnn_forward.1} parent=1 // pred_check
      _
    $region3: #{dnn_forward.1} parent=1 // pred_check_branch
      %13 = sbr.rel (0) target = $region5
    $region4: #{dnn_forward.1} parent=1 // pred_region
      _
    $region5: #{dnn_forward.1} parent=1 // pred_fallthru
      _
    // Predicated region
    $region6: #{dnn_forward.1} parent=1 // pred_check
      _
    $region7: #{dnn_forward.1} parent=1 // pred_check_branch
      %15 = sbr.rel (0) target = $region9
    $region8: #{dnn_forward.1} parent=1 // pred_region
      _
    $region9: #{dnn_forward.1} parent=1 // pred_fallthru
      _
    // Predicated region
    $region10: #{dnn_forward.1} parent=1 // pred_check
      _
    $region11: #{dnn_forward.1} parent=1 // pred_check_branch
      %17 = sbr.rel (0) target = $region13
    $region12: #{dnn_forward.1} parent=1 // pred_region
      _
    $region13: #{dnn_forward.1} parent=1 // pred_fallthru
      _
    // Predicated region
    $region14: #{dnn_forward.1} parent=1 // pred_check
      _
    $region15: #{dnn_forward.1} parent=1 // pred_check_branch
      %19 = sbr.rel (0) target = $region17
    $region16: #{dnn_forward.1} parent=1 // pred_region
      _
    $region17: #{dnn_forward.1} parent=1 // pred_fallthru
      _
    // Predicated region
    $region18: #{dnn_forward.1} parent=1 // pred_check
      _
    $region19: #{dnn_forward.1} parent=1 // pred_check_branch
      %21 = sbr.rel (0) target = $region21
    $region20: #{dnn_forward.1} parent=1 // pred_region
      %s23 = ssub.s32 8192, 8192
      %24 = vsyncadd [#allocation3], %s23
      %s25 = sshll.u32 [#allocation2], 4
      %s26 = int_to_ptr.vmem [resolvable:$true] %s25
      %31 = dma.hbm_to_vmem [thread:$0]  %s4, 8192, %s26, [#allocation3], 256, 256, 16
    $region21: #{dnn_forward.1} parent=1 // pred_fallthru
      _
    // Predicated region
    $region22: #{dnn_forward.1} parent=1 // pred_check
      _
    $region23: #{dnn_forward.1} parent=1 // pred_check_branch
      %33 = sbr.rel (0) target = $region25
    $region24: #{dnn_forward.1} parent=1 // pred_region
      _
    $region25: #{dnn_forward.1} parent=1 // pred_fallthru
      _
    // Predicated region
    $region26: #{dnn_forward.1} parent=1 // pred_check
      _
    $region27: #{dnn_forward.1} parent=1 // pred_check_branch
      %35 = sbr.rel (0) target = $region29
    $region28: #{dnn_forward.1} parent=1 // pred_region
      %36 = dma.done [#allocation3], 8192
    $region29: #{dnn_forward.1} parent=1 // pred_fallthru
      _
    %v37 = vld [vmem:[%s0] sm:$0xff]
    %v38 = vld [vmem:[%s0 + $0x8] sm:$0xff]
    %v39 = vld [vmem:[%s0 + $0x10] sm:$0xff]
    %v40 = vld [vmem:[%s0 + $0x18] sm:$0xff]
    %v41 = vld [vmem:[%s0 + $0x20] sm:$0xff]
    %v42 = vld [vmem:[%s0 + $0x28] sm:$0xff]
    %v43 = vld [vmem:[%s0 + $0x30] sm:$0xff]
    %v44 = vld [vmem:[%s0 + $0x38] sm:$0xff]
    %v45 = vld [vmem:[%s1] sm:$0xff]
    %v46 = vld [vmem:[%s1 + $0x8] sm:$0xff]
    %v47 = vld [vmem:[%s1 + $0x10] sm:$0xff]
    %v48 = vld [vmem:[%s1 + $0x18] sm:$0xff]
    %v49 = vld [vmem:[%s1 + $0x20] sm:$0xff]
    %v50 = vld [vmem:[%s1 + $0x28] sm:$0xff]
    %v51 = vld [vmem:[%s1 + $0x30] sm:$0xff]
    %v52 = vld [vmem:[%s1 + $0x38] sm:$0xff]
    %v53 = vld [vmem:[%s1 + $0x40] sm:$0xff]
    %v54 = vld [vmem:[%s1 + $0x48] sm:$0xff]
    %v55 = vld [vmem:[%s1 + $0x50] sm:$0xff]
    %v56 = vld [vmem:[%s1 + $0x58] sm:$0xff]
    %v57 = vld [vmem:[%s1 + $0x60] sm:$0xff]
    %v58 = vld [vmem:[%s1 + $0x68] sm:$0xff]
    %v59 = vld [vmem:[%s1 + $0x70] sm:$0xff]
    %v60 = vld [vmem:[%s1 + $0x78] sm:$0xff]
    %v61 = vld [vmem:[%s1 + $0x80] sm:$0xff]
    %v62 = vld [vmem:[%s1 + $0x88] sm:$0xff]
    %v63 = vld [vmem:[%s1 + $0x90] sm:$0xff]
    %v64 = vld [vmem:[%s1 + $0x98] sm:$0xff]
    %v65 = vld [vmem:[%s1 + $0xa0] sm:$0xff]
    %v66 = vld [vmem:[%s1 + $0xa8] sm:$0xff]
    %v67 = vld [vmem:[%s1 + $0xb0] sm:$0xff]
    %v68 = vld [vmem:[%s1 + $0xb8] sm:$0xff]
    %v69 = vld [vmem:[%s1 + $0xc0] sm:$0xff]
    %v70 = vld [vmem:[%s1 + $0xc8] sm:$0xff]
    %v71 = vld [vmem:[%s1 + $0xd0] sm:$0xff]
    %v72 = vld [vmem:[%s1 + $0xd8] sm:$0xff]
    %v73 = vld [vmem:[%s1 + $0xe0] sm:$0xff]
    %v74 = vld [vmem:[%s1 + $0xe8] sm:$0xff]
    %v75 = vld [vmem:[%s1 + $0xf0] sm:$0xff]
    %v76 = vld [vmem:[%s1 + $0xf8] sm:$0xff]
    %v77 = vld [vmem:[%s5] sm:$0xff]
    %v78 = vld [vmem:[%s5 + $0x8] sm:$0xff]
    %v79 = vld [vmem:[%s5 + $0x10] sm:$0xff]
    %v80 = vld [vmem:[%s5 + $0x18] sm:$0xff]
    %v81 = vld [vmem:[%s5 + $0x20] sm:$0xff]
    %v82 = vld [vmem:[%s5 + $0x28] sm:$0xff]
    %v83 = vld [vmem:[%s5 + $0x30] sm:$0xff]
    %v84 = vld [vmem:[%s5 + $0x38] sm:$0xff]
    %v85 = vld [vmem:[%s5 + $0x40] sm:$0xff]
    %v86 = vld [vmem:[%s5 + $0x48] sm:$0xff]
    %v87 = vld [vmem:[%s5 + $0x50] sm:$0xff]
    %v88 = vld [vmem:[%s5 + $0x58] sm:$0xff]
    %v89 = vld [vmem:[%s5 + $0x60] sm:$0xff]
    %v90 = vld [vmem:[%s5 + $0x68] sm:$0xff]
    %v91 = vld [vmem:[%s5 + $0x70] sm:$0xff]
    %v92 = vld [vmem:[%s5 + $0x78] sm:$0xff]
    %v93 = vld [vmem:[%s5 + $0x80] sm:$0xff]
    %v94 = vld [vmem:[%s5 + $0x88] sm:$0xff]
    %v95 = vld [vmem:[%s5 + $0x90] sm:$0xff]
    %v96 = vld [vmem:[%s5 + $0x98] sm:$0xff]
    %v97 = vld [vmem:[%s5 + $0xa0] sm:$0xff]
    %v98 = vld [vmem:[%s5 + $0xa8] sm:$0xff]
    %v99 = vld [vmem:[%s5 + $0xb0] sm:$0xff]
    %v100 = vld [vmem:[%s5 + $0xb8] sm:$0xff]
    %v101 = vld [vmem:[%s5 + $0xc0] sm:$0xff]
    %v102 = vld [vmem:[%s5 + $0xc8] sm:$0xff]
    %v103 = vld [vmem:[%s5 + $0xd0] sm:$0xff]
    %v104 = vld [vmem:[%s5 + $0xd8] sm:$0xff]
    %v105 = vld [vmem:[%s5 + $0xe0] sm:$0xff]
    %v106 = vld [vmem:[%s5 + $0xe8] sm:$0xff]
    %v107 = vld [vmem:[%s5 + $0xf0] sm:$0xff]
    %v108 = vld [vmem:[%s5 + $0xf8] sm:$0xff]
    %110 = vset.pattern.permute.xlu0 0
    %111 = vperm.xlu0 %110, %v77
    %v112 = vpop.permute.xlu0 %111
    %115 = vset.pattern.permute.xlu0 0
    %116 = vperm.xlu0 %115, %v78
    %v117 = vpop.permute.xlu0 %116
    %120 = vset.pattern.permute.xlu0 0
    %121 = vperm.xlu0 %120, %v79
    %v122 = vpop.permute.xlu0 %121
    %125 = vset.pattern.permute.xlu0 0
    %126 = vperm.xlu0 %125, %v80
    %v127 = vpop.permute.xlu0 %126
    %130 = vset.pattern.permute.xlu0 0
    %131 = vperm.xlu0 %130, %v81
    %v132 = vpop.permute.xlu0 %131
    %135 = vset.pattern.permute.xlu0 0
    %136 = vperm.xlu0 %135, %v82
    %v137 = vpop.permute.xlu0 %136
    %140 = vset.pattern.permute.xlu0 0
    %141 = vperm.xlu0 %140, %v83
    %v142 = vpop.permute.xlu0 %141
    %145 = vset.pattern.permute.xlu0 0
    %146 = vperm.xlu0 %145, %v84
    %v147 = vpop.permute.xlu0 %146
    %150 = vset.pattern.permute.xlu0 0
    %151 = vperm.xlu0 %150, %v85
    %v152 = vpop.permute.xlu0 %151
    %155 = vset.pattern.permute.xlu0 0
    %156 = vperm.xlu0 %155, %v86
    %v157 = vpop.permute.xlu0 %156
    %160 = vset.pattern.permute.xlu0 0
    %161 = vperm.xlu0 %160, %v87
    %v162 = vpop.permute.xlu0 %161
    %165 = vset.pattern.permute.xlu0 0
    %166 = vperm.xlu0 %165, %v88
    %v167 = vpop.permute.xlu0 %166
    %170 = vset.pattern.permute.xlu0 0
    %171 = vperm.xlu0 %170, %v89
    %v172 = vpop.permute.xlu0 %171
    %175 = vset.pattern.permute.xlu0 0
    %176 = vperm.xlu0 %175, %v90
    %v177 = vpop.permute.xlu0 %176
    %180 = vset.pattern.permute.xlu0 0
    %181 = vperm.xlu0 %180, %v91
    %v182 = vpop.permute.xlu0 %181
    %185 = vset.pattern.permute.xlu0 0
    %186 = vperm.xlu0 %185, %v92
    %v187 = vpop.permute.xlu0 %186
    %190 = vset.pattern.permute.xlu0 0
    %191 = vperm.xlu0 %190, %v93
    %v192 = vpop.permute.xlu0 %191
    %195 = vset.pattern.permute.xlu0 0
    %196 = vperm.xlu0 %195, %v94
    %v197 = vpop.permute.xlu0 %196
    %200 = vset.pattern.permute.xlu0 0
    %201 = vperm.xlu0 %200, %v95
    %v202 = vpop.permute.xlu0 %201
    %205 = vset.pattern.permute.xlu0 0
    %206 = vperm.xlu0 %205, %v96
    %v207 = vpop.permute.xlu0 %206
    %210 = vset.pattern.permute.xlu0 0
    %211 = vperm.xlu0 %210, %v97
    %v212 = vpop.permute.xlu0 %211
    %215 = vset.pattern.permute.xlu0 0
    %216 = vperm.xlu0 %215, %v98
    %v217 = vpop.permute.xlu0 %216
    %220 = vset.pattern.permute.xlu0 0
    %221 = vperm.xlu0 %220, %v99
    %v222 = vpop.permute.xlu0 %221
    %225 = vset.pattern.permute.xlu0 0
    %226 = vperm.xlu0 %225, %v100
    %v227 = vpop.permute.xlu0 %226
    %230 = vset.pattern.permute.xlu0 0
    %231 = vperm.xlu0 %230, %v101
    %v232 = vpop.permute.xlu0 %231
    %235 = vset.pattern.permute.xlu0 0
    %236 = vperm.xlu0 %235, %v102
    %v237 = vpop.permute.xlu0 %236
    %240 = vset.pattern.permute.xlu0 0
    %241 = vperm.xlu0 %240, %v103
    %v242 = vpop.permute.xlu0 %241
    %245 = vset.pattern.permute.xlu0 0
    %246 = vperm.xlu0 %245, %v104
    %v247 = vpop.permute.xlu0 %246
    %250 = vset.pattern.permute.xlu0 0
    %251 = vperm.xlu0 %250, %v105
    %v252 = vpop.permute.xlu0 %251
    %255 = vset.pattern.permute.xlu0 0
    %256 = vperm.xlu0 %255, %v106
    %v257 = vpop.permute.xlu0 %256
    %260 = vset.pattern.permute.xlu0 0
    %261 = vperm.xlu0 %260, %v107
    %v262 = vpop.permute.xlu0 %261
    %265 = vset.pattern.permute.xlu0 0
    %266 = vperm.xlu0 %265, %v108
    %v267 = vpop.permute.xlu0 %266
    %vm269 = vcmask 523264
    %v271 = vsel %vm269, %v45, 0
    %v274 = vsel %vm269, %v46, 0
    %v277 = vsel %vm269, %v47, 0
    %v280 = vsel %vm269, %v48, 0
    %v283 = vsel %vm269, %v49, 0
    %v286 = vsel %vm269, %v50, 0
    %v289 = vsel %vm269, %v51, 0
    %v292 = vsel %vm269, %v52, 0
    %v295 = vsel %vm269, %v53, 0
    %v298 = vsel %vm269, %v54, 0
    %v301 = vsel %vm269, %v55, 0
    %v304 = vsel %vm269, %v56, 0
    %v307 = vsel %vm269, %v57, 0
    %v310 = vsel %vm269, %v58, 0
    %v313 = vsel %vm269, %v59, 0
    %v316 = vsel %vm269, %v60, 0
    %v319 = vsel %vm269, %v61, 0
    %v322 = vsel %vm269, %v62, 0
    %v325 = vsel %vm269, %v63, 0
    %v328 = vsel %vm269, %v64, 0
    %v331 = vsel %vm269, %v65, 0
    %v334 = vsel %vm269, %v66, 0
    %v337 = vsel %vm269, %v67, 0
    %v340 = vsel %vm269, %v68, 0
    %v343 = vsel %vm269, %v69, 0
    %v346 = vsel %vm269, %v70, 0
    %v349 = vsel %vm269, %v71, 0
    %v352 = vsel %vm269, %v72, 0
    %v355 = vsel %vm269, %v73, 0
    %v358 = vsel %vm269, %v74, 0
    %v361 = vsel %vm269, %v75, 0
    %v364 = vsel %vm269, %v76, 0
    %366 = vmatprep.subr.mxu0 0.0
    %367 = vmatpush1.msra.mxu0 %v37
    %368 = vmatprep.subr.mxu0 0.0
    %369 = vmatpush1.msra.mxu0 %v38
    %370 = vmatprep.subr.mxu0 0.0
    %371 = vmatpush1.msra.mxu0 %v39
    %372 = vmatprep.subr.mxu0 0.0
    %373 = vmatpush1.msra.mxu0 %v40
    %374 = vmatprep.subr.mxu0 0.0
    %375 = vmatpush1.msra.mxu0 %v41
    %376 = vmatprep.subr.mxu0 0.0
    %377 = vmatpush1.msra.mxu0 %v42
    %378 = vmatprep.subr.mxu0 0.0
    %379 = vmatpush1.msra.mxu0 %v43
    %380 = vmatprep.subr.mxu0 0.0
    %381 = vmatpush1.msra.mxu0 %v44
    %382 = vmatprep.subr.mxu0 0.0
    %383 = vmatpush1.msra.mxu0 0.0
    %384 = vmatprep.subr.mxu0 0.0
    %385 = vmatpush1.msra.mxu0 0.0
    %386 = vmatprep.subr.mxu0 0.0
    %387 = vmatpush1.msra.mxu0 0.0
    %388 = vmatprep.subr.mxu0 0.0
    %389 = vmatpush1.msra.mxu0 0.0
    %390 = vmatprep.subr.mxu0 0.0
    %391 = vmatpush1.msra.mxu0 0.0
    %392 = vmatprep.subr.mxu0 0.0
    %393 = vmatpush1.msra.mxu0 0.0
    %394 = vmatprep.subr.mxu0 0.0
    %395 = vmatpush1.msra.mxu0 0.0
    %396 = vmatprep.subr.mxu0 0.0
    %397 = vmatpush1.msra.mxu0 0.0
    %398 = vmatprep.subr.mxu0 0.0
    %399 = vmatpush1.msra.mxu0 0.0
    %400 = vmatprep.subr.mxu0 0.0
    %401 = vmatpush1.msra.mxu0 0.0
    %402 = vmatprep.subr.mxu0 0.0
    %403 = vmatpush1.msra.mxu0 0.0
    %404 = vmatprep.subr.mxu0 0.0
    %405 = vmatpush1.msra.mxu0 0.0
    %406 = vmatprep.subr.mxu0 0.0
    %407 = vmatpush1.msra.mxu0 0.0
    %408 = vmatprep.subr.mxu0 0.0
    %409 = vmatpush1.msra.mxu0 0.0
    %410 = vmatprep.subr.mxu0 0.0
    %411 = vmatpush1.msra.mxu0 0.0
    %412 = vmatprep.subr.mxu0 0.0
    %413 = vmatpush1.msra.mxu0 0.0
    %414 = vmatprep.subr.mxu0 0.0
    %415 = vmatpush1.msra.mxu0 0.0
    %416 = vmatprep.subr.mxu0 0.0
    %417 = vmatpush1.msra.mxu0 0.0
    %418 = vmatprep.subr.mxu0 0.0
    %419 = vmatpush1.msra.mxu0 0.0
    %420 = vmatprep.subr.mxu0 0.0
    %421 = vmatpush1.msra.mxu0 0.0
    %422 = vmatprep.subr.mxu0 0.0
    %423 = vmatpush1.msra.mxu0 0.0
    %424 = vmatprep.subr.mxu0 0.0
    %425 = vmatpush1.msra.mxu0 0.0
    %426 = vmatprep.subr.mxu0 0.0
    %427 = vmatpush1.msra.mxu0 0.0
    %428 = vmatprep.subr.mxu0 0.0
    %429 = vmatpush1.msra.mxu0 0.0
    %430 = vmatprep.mubr.f32.mxu0 0.0
    %431 = vmatmul.mubr.f32.gmra.mrb[0].mxu0 %v271
    %v432 = vpop.f32.mrb[0].mxu0
    %v433 = vadd.f32 %v112, %v432
    %v434 = vpop.f32.mrb[0].mxu0
    %435 = vmatprep.mubr.f32.mxu0 0.0
    %436 = vmatmul.mubr.f32.gmra.mrb[0].mxu0 %v274
    %v437 = vpop.f32.mrb[0].mxu0
    %v438 = vadd.f32 %v117, %v437
    %v439 = vpop.f32.mrb[0].mxu0
    %440 = vmatprep.mubr.f32.mxu0 0.0
    %441 = vmatmul.mubr.f32.gmra.mrb[0].mxu0 %v277
    %v442 = vpop.f32.mrb[0].mxu0
    %v443 = vadd.f32 %v122, %v442
    %v444 = vpop.f32.mrb[0].mxu0
    %445 = vmatprep.mubr.f32.mxu0 0.0
    %446 = vmatmul.mubr.f32.gmra.mrb[0].mxu0 %v280
    %v447 = vpop.f32.mrb[0].mxu0
    %v448 = vadd.f32 %v127, %v447
    %v449 = vpop.f32.mrb[0].mxu0
    %450 = vmatprep.mubr.f32.mxu0 0.0
    %451 = vmatmul.mubr.f32.gmra.mrb[0].mxu0 %v283
    %v452 = vpop.f32.mrb[0].mxu0
    %v453 = vadd.f32 %v132, %v452
    %v454 = vpop.f32.mrb[0].mxu0
    %455 = vmatprep.mubr.f32.mxu0 0.0
    %456 = vmatmul.mubr.f32.gmra.mrb[0].mxu0 %v286
    %v457 = vpop.f32.mrb[0].mxu0
    %v458 = vadd.f32 %v137, %v457
    %v459 = vpop.f32.mrb[0].mxu0
    %460 = vmatprep.mubr.f32.mxu0 0.0
    %461 = vmatmul.mubr.f32.gmra.mrb[0].mxu0 %v289
    %v462 = vpop.f32.mrb[0].mxu0
    %v463 = vadd.f32 %v142, %v462
    %v464 = vpop.f32.mrb[0].mxu0
    %465 = vmatprep.mubr.f32.mxu0 0.0
    %466 = vmatmul.mubr.f32.gmra.mrb[0].mxu0 %v292
    %v467 = vpop.f32.mrb[0].mxu0
    %v468 = vadd.f32 %v147, %v467
    %v469 = vpop.f32.mrb[0].mxu0
    %470 = vmatprep.mubr.f32.mxu0 0.0
    %471 = vmatmul.mubr.f32.gmra.mrb[0].mxu0 %v295
    %v472 = vpop.f32.mrb[0].mxu0
    %v473 = vadd.f32 %v152, %v472
    %v474 = vpop.f32.mrb[0].mxu0
    %475 = vmatprep.mubr.f32.mxu0 0.0
    %476 = vmatmul.mubr.f32.gmra.mrb[0].mxu0 %v298
    %v477 = vpop.f32.mrb[0].mxu0
    %v478 = vadd.f32 %v157, %v477
    %v479 = vpop.f32.mrb[0].mxu0
    %480 = vmatprep.mubr.f32.mxu0 0.0
    %481 = vmatmul.mubr.f32.gmra.mrb[0].mxu0 %v301
    %v482 = vpop.f32.mrb[0].mxu0
    %v483 = vadd.f32 %v162, %v482
    %v484 = vpop.f32.mrb[0].mxu0
    %485 = vmatprep.mubr.f32.mxu0 0.0
    %486 = vmatmul.mubr.f32.gmra.mrb[0].mxu0 %v304
    %v487 = vpop.f32.mrb[0].mxu0
    %v488 = vadd.f32 %v167, %v487
    %v489 = vpop.f32.mrb[0].mxu0
    %490 = vmatprep.mubr.f32.mxu0 0.0
    %491 = vmatmul.mubr.f32.gmra.mrb[0].mxu0 %v307
    %v492 = vpop.f32.mrb[0].mxu0
    %v493 = vadd.f32 %v172, %v492
    %v494 = vpop.f32.mrb[0].mxu0
    %495 = vmatprep.mubr.f32.mxu0 0.0
    %496 = vmatmul.mubr.f32.gmra.mrb[0].mxu0 %v310
    %v497 = vpop.f32.mrb[0].mxu0
    %v498 = vadd.f32 %v177, %v497
    %v499 = vpop.f32.mrb[0].mxu0
    %500 = vmatprep.mubr.f32.mxu0 0.0
    %501 = vmatmul.mubr.f32.gmra.mrb[0].mxu0 %v313
    %v502 = vpop.f32.mrb[0].mxu0
    %v503 = vadd.f32 %v182, %v502
    %v504 = vpop.f32.mrb[0].mxu0
    %505 = vmatprep.mubr.f32.mxu0 0.0
    %506 = vmatmul.mubr.f32.gmra.mrb[0].mxu0 %v316
    %v507 = vpop.f32.mrb[0].mxu0
    %v508 = vadd.f32 %v187, %v507
    %v509 = vpop.f32.mrb[0].mxu0
    %510 = vmatprep.mubr.f32.mxu0 0.0
    %511 = vmatmul.mubr.f32.gmra.mrb[0].mxu0 %v319
    %v512 = vpop.f32.mrb[0].mxu0
    %v513 = vadd.f32 %v192, %v512
    %v514 = vpop.f32.mrb[0].mxu0
    %515 = vmatprep.mubr.f32.mxu0 0.0
    %516 = vmatmul.mubr.f32.gmra.mrb[0].mxu0 %v322
    %v517 = vpop.f32.mrb[0].mxu0
    %v518 = vadd.f32 %v197, %v517
    %v519 = vpop.f32.mrb[0].mxu0
    %520 = vmatprep.mubr.f32.mxu0 0.0
    %521 = vmatmul.mubr.f32.gmra.mrb[0].mxu0 %v325
    %v522 = vpop.f32.mrb[0].mxu0
    %v523 = vadd.f32 %v202, %v522
    %v524 = vpop.f32.mrb[0].mxu0
    %525 = vmatprep.mubr.f32.mxu0 0.0
    %526 = vmatmul.mubr.f32.gmra.mrb[0].mxu0 %v328
    %v527 = vpop.f32.mrb[0].mxu0
    %v528 = vadd.f32 %v207, %v527
    %v529 = vpop.f32.mrb[0].mxu0
    %530 = vmatprep.mubr.f32.mxu0 0.0
    %531 = vmatmul.mubr.f32.gmra.mrb[0].mxu0 %v331
    %v532 = vpop.f32.mrb[0].mxu0
    %v533 = vadd.f32 %v212, %v532
    %v534 = vpop.f32.mrb[0].mxu0
    %535 = vmatprep.mubr.f32.mxu0 0.0
    %536 = vmatmul.mubr.f32.gmra.mrb[0].mxu0 %v334
    %v537 = vpop.f32.mrb[0].mxu0
    %v538 = vadd.f32 %v217, %v537
    %v539 = vpop.f32.mrb[0].mxu0
    %540 = vmatprep.mubr.f32.mxu0 0.0
    %541 = vmatmul.mubr.f32.gmra.mrb[0].mxu0 %v337
    %v542 = vpop.f32.mrb[0].mxu0
    %v543 = vadd.f32 %v222, %v542
    %v544 = vpop.f32.mrb[0].mxu0
    %545 = vmatprep.mubr.f32.mxu0 0.0
    %546 = vmatmul.mubr.f32.gmra.mrb[0].mxu0 %v340
    %v547 = vpop.f32.mrb[0].mxu0
    %v548 = vadd.f32 %v227, %v547
    %v549 = vpop.f32.mrb[0].mxu0
    %550 = vmatprep.mubr.f32.mxu0 0.0
    %551 = vmatmul.mubr.f32.gmra.mrb[0].mxu0 %v343
    %v552 = vpop.f32.mrb[0].mxu0
    %v553 = vadd.f32 %v232, %v552
    %v554 = vpop.f32.mrb[0].mxu0
    %555 = vmatprep.mubr.f32.mxu0 0.0
    %556 = vmatmul.mubr.f32.gmra.mrb[0].mxu0 %v346
    %v557 = vpop.f32.mrb[0].mxu0
    %v558 = vadd.f32 %v237, %v557
    %v559 = vpop.f32.mrb[0].mxu0
    %560 = vmatprep.mubr.f32.mxu0 0.0
    %561 = vmatmul.mubr.f32.gmra.mrb[0].mxu0 %v349
    %v562 = vpop.f32.mrb[0].mxu0
    %v563 = vadd.f32 %v242, %v562
    %v564 = vpop.f32.mrb[0].mxu0
    %565 = vmatprep.mubr.f32.mxu0 0.0
    %566 = vmatmul.mubr.f32.gmra.mrb[0].mxu0 %v352
    %v567 = vpop.f32.mrb[0].mxu0
    %v568 = vadd.f32 %v247, %v567
    %v569 = vpop.f32.mrb[0].mxu0
    %570 = vmatprep.mubr.f32.mxu0 0.0
    %571 = vmatmul.mubr.f32.gmra.mrb[0].mxu0 %v355
    %v572 = vpop.f32.mrb[0].mxu0
    %v573 = vadd.f32 %v252, %v572
    %v574 = vpop.f32.mrb[0].mxu0
    %575 = vmatprep.mubr.f32.mxu0 0.0
    %576 = vmatmul.mubr.f32.gmra.mrb[0].mxu0 %v358
    %v577 = vpop.f32.mrb[0].mxu0
    %v578 = vadd.f32 %v257, %v577
    %v579 = vpop.f32.mrb[0].mxu0
    %580 = vmatprep.mubr.f32.mxu0 0.0
    %581 = vmatmul.mubr.f32.gmra.mrb[0].mxu0 %v361
    %v582 = vpop.f32.mrb[0].mxu0
    %v583 = vadd.f32 %v262, %v582
    %v584 = vpop.f32.mrb[0].mxu0
    %585 = vmatprep.mubr.f32.mxu0 0.0
    %586 = vmatmul.mubr.f32.gmra.mrb[0].mxu0 %v364
    %v587 = vpop.f32.mrb[0].mxu0
    %v588 = vadd.f32 %v267, %v587
    %v589 = vpop.f32.mrb[0].mxu0
    %590 = vdwg.mxu0
    %v591 = vmax.f32 %v433, 0.0
    %v592 = vmax.f32 %v438, 0.0
    %v593 = vmax.f32 %v443, 0.0
    %v594 = vmax.f32 %v448, 0.0
    %v595 = vmax.f32 %v453, 0.0
    %v596 = vmax.f32 %v458, 0.0
    %v597 = vmax.f32 %v463, 0.0
    %v598 = vmax.f32 %v468, 0.0
    %v599 = vmax.f32 %v473, 0.0
    %v600 = vmax.f32 %v478, 0.0
    %v601 = vmax.f32 %v483, 0.0
    %v602 = vmax.f32 %v488, 0.0
    %v603 = vmax.f32 %v493, 0.0
    %v604 = vmax.f32 %v498, 0.0
    %v605 = vmax.f32 %v503, 0.0
    %v606 = vmax.f32 %v508, 0.0
    %v607 = vmax.f32 %v513, 0.0
    %v608 = vmax.f32 %v518, 0.0
    %v609 = vmax.f32 %v523, 0.0
    %v610 = vmax.f32 %v528, 0.0
    %v611 = vmax.f32 %v533, 0.0
    %v612 = vmax.f32 %v538, 0.0
    %v613 = vmax.f32 %v543, 0.0
    %v614 = vmax.f32 %v548, 0.0
    %v615 = vmax.f32 %v553, 0.0
    %v616 = vmax.f32 %v558, 0.0
    %v617 = vmax.f32 %v563, 0.0
    %v618 = vmax.f32 %v568, 0.0
    %v619 = vmax.f32 %v573, 0.0
    %v620 = vmax.f32 %v578, 0.0
    %v621 = vmax.f32 %v583, 0.0
    %v622 = vmax.f32 %v588, 0.0
    %v623 = vld [vmem:[%s2] sm:$0xff]
    %v624 = vld [vmem:[%s2 + $0x8] sm:$0xff]
    %v625 = vld [vmem:[%s2 + $0x10] sm:$0xff]
    %v626 = vld [vmem:[%s2 + $0x18] sm:$0xff]
    %v627 = vld [vmem:[%s2 + $0x20] sm:$0xff]
    %v628 = vld [vmem:[%s2 + $0x28] sm:$0xff]
    %v629 = vld [vmem:[%s2 + $0x30] sm:$0xff]
    %v630 = vld [vmem:[%s2 + $0x38] sm:$0xff]
    %v631 = vld [vmem:[%s2 + $0x40] sm:$0xff]
    %v632 = vld [vmem:[%s2 + $0x48] sm:$0xff]
    %v633 = vld [vmem:[%s2 + $0x50] sm:$0xff]
    %v634 = vld [vmem:[%s2 + $0x58] sm:$0xff]
    %v635 = vld [vmem:[%s2 + $0x60] sm:$0xff]
    %v636 = vld [vmem:[%s2 + $0x68] sm:$0xff]
    %v637 = vld [vmem:[%s2 + $0x70] sm:$0xff]
    %v638 = vld [vmem:[%s2 + $0x78] sm:$0xff]
    %v639 = vld [vmem:[%s2 + $0x80] sm:$0xff]
    %v640 = vld [vmem:[%s2 + $0x88] sm:$0xff]
    %v641 = vld [vmem:[%s2 + $0x90] sm:$0xff]
    %v642 = vld [vmem:[%s2 + $0x98] sm:$0xff]
    %v643 = vld [vmem:[%s2 + $0xa0] sm:$0xff]
    %v644 = vld [vmem:[%s2 + $0xa8] sm:$0xff]
    %v645 = vld [vmem:[%s2 + $0xb0] sm:$0xff]
    %v646 = vld [vmem:[%s2 + $0xb8] sm:$0xff]
    %v647 = vld [vmem:[%s2 + $0xc0] sm:$0xff]
    %v648 = vld [vmem:[%s2 + $0xc8] sm:$0xff]
    %v649 = vld [vmem:[%s2 + $0xd0] sm:$0xff]
    %v650 = vld [vmem:[%s2 + $0xd8] sm:$0xff]
    %v651 = vld [vmem:[%s2 + $0xe0] sm:$0xff]
    %v652 = vld [vmem:[%s2 + $0xe8] sm:$0xff]
    %v653 = vld [vmem:[%s2 + $0xf0] sm:$0xff]
    %v654 = vld [vmem:[%s2 + $0xf8] sm:$0xff]
    %v655 = vld [vmem:[%s2 + $0x100] sm:$0xff]
    %v656 = vld [vmem:[%s2 + $0x108] sm:$0xff]
    %v657 = vld [vmem:[%s2 + $0x110] sm:$0xff]
    %v658 = vld [vmem:[%s2 + $0x118] sm:$0xff]
    %v659 = vld [vmem:[%s2 + $0x120] sm:$0xff]
    %v660 = vld [vmem:[%s2 + $0x128] sm:$0xff]
    %v661 = vld [vmem:[%s2 + $0x130] sm:$0xff]
    %v662 = vld [vmem:[%s2 + $0x138] sm:$0xff]
    %v663 = vld [vmem:[%s2 + $0x140] sm:$0xff]
    %v664 = vld [vmem:[%s2 + $0x148] sm:$0xff]
    %v665 = vld [vmem:[%s2 + $0x150] sm:$0xff]
    %v666 = vld [vmem:[%s2 + $0x158] sm:$0xff]
    %v667 = vld [vmem:[%s2 + $0x160] sm:$0xff]
    %v668 = vld [vmem:[%s2 + $0x168] sm:$0xff]
    %v669 = vld [vmem:[%s2 + $0x170] sm:$0xff]
    %v670 = vld [vmem:[%s2 + $0x178] sm:$0xff]
    %v671 = vld [vmem:[%s2 + $0x180] sm:$0xff]
    %v672 = vld [vmem:[%s2 + $0x188] sm:$0xff]
    %v673 = vld [vmem:[%s2 + $0x190] sm:$0xff]
    %v674 = vld [vmem:[%s2 + $0x198] sm:$0xff]
    %v675 = vld [vmem:[%s2 + $0x1a0] sm:$0xff]
    %v676 = vld [vmem:[%s2 + $0x1a8] sm:$0xff]
    %v677 = vld [vmem:[%s2 + $0x1b0] sm:$0xff]
    %v678 = vld [vmem:[%s2 + $0x1b8] sm:$0xff]
    %v679 = vld [vmem:[%s2 + $0x1c0] sm:$0xff]
    %v680 = vld [vmem:[%s2 + $0x1c8] sm:$0xff]
    %v681 = vld [vmem:[%s2 + $0x1d0] sm:$0xff]
    %v682 = vld [vmem:[%s2 + $0x1d8] sm:$0xff]
    %v683 = vld [vmem:[%s2 + $0x1e0] sm:$0xff]
    %v684 = vld [vmem:[%s2 + $0x1e8] sm:$0xff]
    %v685 = vld [vmem:[%s2 + $0x1f0] sm:$0xff]
    %v686 = vld [vmem:[%s2 + $0x1f8] sm:$0xff]
    %687 = vset.pattern.permute.xlu0 1
    %688 = vperm.xlu0 %687, %v77
    %v689 = vpop.permute.xlu0 %688
    %691 = vset.pattern.permute.xlu0 1
    %692 = vperm.xlu0 %691, %v78
    %v693 = vpop.permute.xlu0 %692
    %695 = vset.pattern.permute.xlu0 1
    %696 = vperm.xlu0 %695, %v79
    %v697 = vpop.permute.xlu0 %696
    %699 = vset.pattern.permute.xlu0 1
    %700 = vperm.xlu0 %699, %v80
    %v701 = vpop.permute.xlu0 %700
    %703 = vset.pattern.permute.xlu0 1
    %704 = vperm.xlu0 %703, %v81
    %v705 = vpop.permute.xlu0 %704
    %707 = vset.pattern.permute.xlu0 1
    %708 = vperm.xlu0 %707, %v82
    %v709 = vpop.permute.xlu0 %708
    %711 = vset.pattern.permute.xlu0 1
    %712 = vperm.xlu0 %711, %v83
    %v713 = vpop.permute.xlu0 %712
    %715 = vset.pattern.permute.xlu0 1
    %716 = vperm.xlu0 %715, %v84
    %v717 = vpop.permute.xlu0 %716
    %719 = vset.pattern.permute.xlu0 1
    %720 = vperm.xlu0 %719, %v85
    %v721 = vpop.permute.xlu0 %720
    %723 = vset.pattern.permute.xlu0 1
    %724 = vperm.xlu0 %723, %v86
    %v725 = vpop.permute.xlu0 %724
    %727 = vset.pattern.permute.xlu0 1
    %728 = vperm.xlu0 %727, %v87
    %v729 = vpop.permute.xlu0 %728
    %731 = vset.pattern.permute.xlu0 1
    %732 = vperm.xlu0 %731, %v88
    %v733 = vpop.permute.xlu0 %732
    %735 = vset.pattern.permute.xlu0 1
    %736 = vperm.xlu0 %735, %v89
    %v737 = vpop.permute.xlu0 %736
    %739 = vset.pattern.permute.xlu0 1
    %740 = vperm.xlu0 %739, %v90
    %v741 = vpop.permute.xlu0 %740
    %743 = vset.pattern.permute.xlu0 1
    %744 = vperm.xlu0 %743, %v91
    %v745 = vpop.permute.xlu0 %744
    %747 = vset.pattern.permute.xlu0 1
    %748 = vperm.xlu0 %747, %v92
    %v749 = vpop.permute.xlu0 %748
    %751 = vset.pattern.permute.xlu0 1
    %752 = vperm.xlu0 %751, %v93
    %v753 = vpop.permute.xlu0 %752
    %755 = vset.pattern.permute.xlu0 1
    %756 = vperm.xlu0 %755, %v94
    %v757 = vpop.permute.xlu0 %756
    %759 = vset.pattern.permute.xlu0 1
    %760 = vperm.xlu0 %759, %v95
    %v761 = vpop.permute.xlu0 %760
    %763 = vset.pattern.permute.xlu0 1
    %764 = vperm.xlu0 %763, %v96
    %v765 = vpop.permute.xlu0 %764
    %767 = vset.pattern.permute.xlu0 1
    %768 = vperm.xlu0 %767, %v97
    %v769 = vpop.permute.xlu0 %768
    %771 = vset.pattern.permute.xlu0 1
    %772 = vperm.xlu0 %771, %v98
    %v773 = vpop.permute.xlu0 %772
    %775 = vset.pattern.permute.xlu0 1
    %776 = vperm.xlu0 %775, %v99
    %v777 = vpop.permute.xlu0 %776
    %779 = vset.pattern.permute.xlu0 1
    %780 = vperm.xlu0 %779, %v100
    %v781 = vpop.permute.xlu0 %780
    %783 = vset.pattern.permute.xlu0 1
    %784 = vperm.xlu0 %783, %v101
    %v785 = vpop.permute.xlu0 %784
    %787 = vset.pattern.permute.xlu0 1
    %788 = vperm.xlu0 %787, %v102
    %v789 = vpop.permute.xlu0 %788
    %791 = vset.pattern.permute.xlu0 1
    %792 = vperm.xlu0 %791, %v103
    %v793 = vpop.permute.xlu0 %792
    %795 = vset.pattern.permute.xlu0 1
    %796 = vperm.xlu0 %795, %v104
    %v797 = vpop.permute.xlu0 %796
    %799 = vset.pattern.permute.xlu0 1
    %800 = vperm.xlu0 %799, %v105
    %v801 = vpop.permute.xlu0 %800
    %803 = vset.pattern.permute.xlu0 1
    %804 = vperm.xlu0 %803, %v106
    %v805 = vpop.permute.xlu0 %804
    %807 = vset.pattern.permute.xlu0 1
    %808 = vperm.xlu0 %807, %v107
    %v809 = vpop.permute.xlu0 %808
    %811 = vset.pattern.permute.xlu0 1
    %812 = vperm.xlu0 %811, %v108
    %v813 = vpop.permute.xlu0 %812
    %815 = vmatprep.subr.mxu0 0.0
    %816 = vmatpush1.msra.mxu0 %v591
    %817 = vmatprep.subr.mxu0 0.0
    %818 = vmatpush1.msra.mxu0 %v592
    %819 = vmatprep.subr.mxu0 0.0
    %820 = vmatpush1.msra.mxu0 %v593
    %821 = vmatprep.subr.mxu0 0.0
    %822 = vmatpush1.msra.mxu0 %v594
    %823 = vmatprep.subr.mxu0 0.0
    %824 = vmatpush1.msra.mxu0 %v595
    %825 = vmatprep.subr.mxu0 0.0
    %826 = vmatpush1.msra.mxu0 %v596
    %827 = vmatprep.subr.mxu0 0.0
    %828 = vmatpush1.msra.mxu0 %v597
    %829 = vmatprep.subr.mxu0 0.0
    %830 = vmatpush1.msra.mxu0 %v598
    %831 = vmatprep.subr.mxu0 0.0
    %832 = vmatpush1.msra.mxu0 %v599
    %833 = vmatprep.subr.mxu0 0.0
    %834 = vmatpush1.msra.mxu0 %v600
    %835 = vmatprep.subr.mxu0 0.0
    %836 = vmatpush1.msra.mxu0 %v601
    %837 = vmatprep.subr.mxu0 0.0
    %838 = vmatpush1.msra.mxu0 %v602
    %839 = vmatprep.subr.mxu0 0.0
    %840 = vmatpush1.msra.mxu0 %v603
    %841 = vmatprep.subr.mxu0 0.0
    %842 = vmatpush1.msra.mxu0 %v604
    %843 = vmatprep.subr.mxu0 0.0
    %844 = vmatpush1.msra.mxu0 %v605
    %845 = vmatprep.subr.mxu0 0.0
    %846 = vmatpush1.msra.mxu0 %v606
    %847 = vmatprep.subr.mxu0 0.0
    %848 = vmatpush1.msra.mxu0 %v607
    %849 = vmatprep.subr.mxu0 0.0
    %850 = vmatpush1.msra.mxu0 %v608
    %851 = vmatprep.subr.mxu0 0.0
    %852 = vmatpush1.msra.mxu0 %v609
    %853 = vmatprep.subr.mxu0 0.0
    %854 = vmatpush1.msra.mxu0 %v610
    %855 = vmatprep.subr.mxu0 0.0
    %856 = vmatpush1.msra.mxu0 %v611
    %857 = vmatprep.subr.mxu0 0.0
    %858 = vmatpush1.msra.mxu0 %v612
    %859 = vmatprep.subr.mxu0 0.0
    %860 = vmatpush1.msra.mxu0 %v613
    %861 = vmatprep.subr.mxu0 0.0
    %862 = vmatpush1.msra.mxu0 %v614
    %863 = vmatprep.subr.mxu0 0.0
    %864 = vmatpush1.msra.mxu0 %v615
    %865 = vmatprep.subr.mxu0 0.0
    %866 = vmatpush1.msra.mxu0 %v616
    %867 = vmatprep.subr.mxu0 0.0
    %868 = vmatpush1.msra.mxu0 %v617
    %869 = vmatprep.subr.mxu0 0.0
    %870 = vmatpush1.msra.mxu0 %v618
    %871 = vmatprep.subr.mxu0 0.0
    %872 = vmatpush1.msra.mxu0 %v619
    %873 = vmatprep.subr.mxu0 0.0
    %874 = vmatpush1.msra.mxu0 %v620
    %875 = vmatprep.subr.mxu0 0.0
    %876 = vmatpush1.msra.mxu0 %v621
    %877 = vmatprep.subr.mxu0 0.0
    %878 = vmatpush1.msra.mxu0 %v622
    %879 = vmatprep.mubr.f32.mxu0 %v624
    %880 = vmatmul.mubr.f32.gmra.mrb[0].mxu0 %v623
    %v881 = vpop.f32.mrb[0].mxu0
    %v882 = vadd.f32 %v689, %v881
    %v883 = vpop.f32.mrb[0].mxu0
    %884 = vmatprep.mubr.f32.mxu0 %v626
    %885 = vmatmul.mubr.f32.gmra.mrb[0].mxu0 %v625
    %v886 = vpop.f32.mrb[0].mxu0
    %v887 = vadd.f32 %v693, %v886
    %v888 = vpop.f32.mrb[0].mxu0
    %889 = vmatprep.mubr.f32.mxu0 %v628
    %890 = vmatmul.mubr.f32.gmra.mrb[0].mxu0 %v627
    %v891 = vpop.f32.mrb[0].mxu0
    %v892 = vadd.f32 %v697, %v891
    %v893 = vpop.f32.mrb[0].mxu0
    %894 = vmatprep.mubr.f32.mxu0 %v630
    %895 = vmatmul.mubr.f32.gmra.mrb[0].mxu0 %v629
    %v896 = vpop.f32.mrb[0].mxu0
    %v897 = vadd.f32 %v701, %v896
    %v898 = vpop.f32.mrb[0].mxu0
    %899 = vmatprep.mubr.f32.mxu0 %v632
    %900 = vmatmul.mubr.f32.gmra.mrb[0].mxu0 %v631
    %v901 = vpop.f32.mrb[0].mxu0
    %v902 = vadd.f32 %v705, %v901
    %v903 = vpop.f32.mrb[0].mxu0
    %904 = vmatprep.mubr.f32.mxu0 %v634
    %905 = vmatmul.mubr.f32.gmra.mrb[0].mxu0 %v633
    %v906 = vpop.f32.mrb[0].mxu0
    %v907 = vadd.f32 %v709, %v906
    %v908 = vpop.f32.mrb[0].mxu0
    %909 = vmatprep.mubr.f32.mxu0 %v636
    %910 = vmatmul.mubr.f32.gmra.mrb[0].mxu0 %v635
    %v911 = vpop.f32.mrb[0].mxu0
    %v912 = vadd.f32 %v713, %v911
    %v913 = vpop.f32.mrb[0].mxu0
    %914 = vmatprep.mubr.f32.mxu0 %v638
    %915 = vmatmul.mubr.f32.gmra.mrb[0].mxu0 %v637
    %v916 = vpop.f32.mrb[0].mxu0
    %v917 = vadd.f32 %v717, %v916
    %v918 = vpop.f32.mrb[0].mxu0
    %919 = vmatprep.mubr.f32.mxu0 %v640
    %920 = vmatmul.mubr.f32.gmra.mrb[0].mxu0 %v639
    %v921 = vpop.f32.mrb[0].mxu0
    %v922 = vadd.f32 %v721, %v921
    %v923 = vpop.f32.mrb[0].mxu0
    %924 = vmatprep.mubr.f32.mxu0 %v642
    %925 = vmatmul.mubr.f32.gmra.mrb[0].mxu0 %v641
    %v926 = vpop.f32.mrb[0].mxu0
    %v927 = vadd.f32 %v725, %v926
    %v928 = vpop.f32.mrb[0].mxu0
    %929 = vmatprep.mubr.f32.mxu0 %v644
    %930 = vmatmul.mubr.f32.gmra.mrb[0].mxu0 %v643
    %v931 = vpop.f32.mrb[0].mxu0
    %v932 = vadd.f32 %v729, %v931
    %v933 = vpop.f32.mrb[0].mxu0
    %934 = vmatprep.mubr.f32.mxu0 %v646
    %935 = vmatmul.mubr.f32.gmra.mrb[0].mxu0 %v645
    %v936 = vpop.f32.mrb[0].mxu0
    %v937 = vadd.f32 %v733, %v936
    %v938 = vpop.f32.mrb[0].mxu0
    %939 = vmatprep.mubr.f32.mxu0 %v648
    %940 = vmatmul.mubr.f32.gmra.mrb[0].mxu0 %v647
    %v941 = vpop.f32.mrb[0].mxu0
    %v942 = vadd.f32 %v737, %v941
    %v943 = vpop.f32.mrb[0].mxu0
    %944 = vmatprep.mubr.f32.mxu0 %v650
    %945 = vmatmul.mubr.f32.gmra.mrb[0].mxu0 %v649
    %v946 = vpop.f32.mrb[0].mxu0
    %v947 = vadd.f32 %v741, %v946
    %v948 = vpop.f32.mrb[0].mxu0
    %949 = vmatprep.mubr.f32.mxu0 %v652
    %950 = vmatmul.mubr.f32.gmra.mrb[0].mxu0 %v651
    %v951 = vpop.f32.mrb[0].mxu0
    %v952 = vadd.f32 %v745, %v951
    %v953 = vpop.f32.mrb[0].mxu0
    %954 = vmatprep.mubr.f32.mxu0 %v654
    %955 = vmatmul.mubr.f32.gmra.mrb[0].mxu0 %v653
    %v956 = vpop.f32.mrb[0].mxu0
    %v957 = vadd.f32 %v749, %v956
    %v958 = vpop.f32.mrb[0].mxu0
    %959 = vmatprep.mubr.f32.mxu0 %v656
    %960 = vmatmul.mubr.f32.gmra.mrb[0].mxu0 %v655
    %v961 = vpop.f32.mrb[0].mxu0
    %v962 = vadd.f32 %v753, %v961
    %v963 = vpop.f32.mrb[0].mxu0
    %964 = vmatprep.mubr.f32.mxu0 %v658
    %965 = vmatmul.mubr.f32.gmra.mrb[0].mxu0 %v657
    %v966 = vpop.f32.mrb[0].mxu0
    %v967 = vadd.f32 %v757, %v966
    %v968 = vpop.f32.mrb[0].mxu0
    %969 = vmatprep.mubr.f32.mxu0 %v660
    %970 = vmatmul.mubr.f32.gmra.mrb[0].mxu0 %v659
    %v971 = vpop.f32.mrb[0].mxu0
    %v972 = vadd.f32 %v761, %v971
    %v973 = vpop.f32.mrb[0].mxu0
    %974 = vmatprep.mubr.f32.mxu0 %v662
    %975 = vmatmul.mubr.f32.gmra.mrb[0].mxu0 %v661
    %v976 = vpop.f32.mrb[0].mxu0
    %v977 = vadd.f32 %v765, %v976
    %v978 = vpop.f32.mrb[0].mxu0
    %979 = vmatprep.mubr.f32.mxu0 %v664
    %980 = vmatmul.mubr.f32.gmra.mrb[0].mxu0 %v663
    %v981 = vpop.f32.mrb[0].mxu0
    %v982 = vadd.f32 %v769, %v981
    %v983 = vpop.f32.mrb[0].mxu0
    %984 = vmatprep.mubr.f32.mxu0 %v666
    %985 = vmatmul.mubr.f32.gmra.mrb[0].mxu0 %v665
    %v986 = vpop.f32.mrb[0].mxu0
    %v987 = vadd.f32 %v773, %v986
    %v988 = vpop.f32.mrb[0].mxu0
    %989 = vmatprep.mubr.f32.mxu0 %v668
    %990 = vmatmul.mubr.f32.gmra.mrb[0].mxu0 %v667
    %v991 = vpop.f32.mrb[0].mxu0
    %v992 = vadd.f32 %v777, %v991
    %v993 = vpop.f32.mrb[0].mxu0
    %994 = vmatprep.mubr.f32.mxu0 %v670
    %995 = vmatmul.mubr.f32.gmra.mrb[0].mxu0 %v669
    %v996 = vpop.f32.mrb[0].mxu0
    %v997 = vadd.f32 %v781, %v996
    %v998 = vpop.f32.mrb[0].mxu0
    %999 = vmatprep.mubr.f32.mxu0 %v672
    %1000 = vmatmul.mubr.f32.gmra.mrb[0].mxu0 %v671
    %v1001 = vpop.f32.mrb[0].mxu0
    %v1002 = vadd.f32 %v785, %v1001
    %v1003 = vpop.f32.mrb[0].mxu0
    %1004 = vmatprep.mubr.f32.mxu0 %v674
    %1005 = vmatmul.mubr.f32.gmra.mrb[0].mxu0 %v673
    %v1006 = vpop.f32.mrb[0].mxu0
    %v1007 = vadd.f32 %v789, %v1006
    %v1008 = vpop.f32.mrb[0].mxu0
    %1009 = vmatprep.mubr.f32.mxu0 %v676
    %1010 = vmatmul.mubr.f32.gmra.mrb[0].mxu0 %v675
    %v1011 = vpop.f32.mrb[0].mxu0
    %v1012 = vadd.f32 %v793, %v1011
    %v1013 = vpop.f32.mrb[0].mxu0
    %1014 = vmatprep.mubr.f32.mxu0 %v678
    %1015 = vmatmul.mubr.f32.gmra.mrb[0].mxu0 %v677
    %v1016 = vpop.f32.mrb[0].mxu0
    %v1017 = vadd.f32 %v797, %v1016
    %v1018 = vpop.f32.mrb[0].mxu0
    %1019 = vmatprep.mubr.f32.mxu0 %v680
    %1020 = vmatmul.mubr.f32.gmra.mrb[0].mxu0 %v679
    %v1021 = vpop.f32.mrb[0].mxu0
    %v1022 = vadd.f32 %v801, %v1021
    %v1023 = vpop.f32.mrb[0].mxu0
    %1024 = vmatprep.mubr.f32.mxu0 %v682
    %1025 = vmatmul.mubr.f32.gmra.mrb[0].mxu0 %v681
    %v1026 = vpop.f32.mrb[0].mxu0
    %v1027 = vadd.f32 %v805, %v1026
    %v1028 = vpop.f32.mrb[0].mxu0
    %1029 = vmatprep.mubr.f32.mxu0 %v684
    %1030 = vmatmul.mubr.f32.gmra.mrb[0].mxu0 %v683
    %v1031 = vpop.f32.mrb[0].mxu0
    %v1032 = vadd.f32 %v809, %v1031
    %v1033 = vpop.f32.mrb[0].mxu0
    %1034 = vmatprep.mubr.f32.mxu0 %v686
    %1035 = vmatmul.mubr.f32.gmra.mrb[0].mxu0 %v685
    %v1036 = vpop.f32.mrb[0].mxu0
    %v1037 = vadd.f32 %v813, %v1036
    %v1038 = vpop.f32.mrb[0].mxu0
    %1039 = vdwg.mxu0
    %v1040 = vmax.f32 %v882, 0.0
    %v1041 = vmax.f32 %v887, 0.0
    %v1042 = vmax.f32 %v892, 0.0
    %v1043 = vmax.f32 %v897, 0.0
    %v1044 = vmax.f32 %v902, 0.0
    %v1045 = vmax.f32 %v907, 0.0
    %v1046 = vmax.f32 %v912, 0.0
    %v1047 = vmax.f32 %v917, 0.0
    %v1048 = vmax.f32 %v922, 0.0
    %v1049 = vmax.f32 %v927, 0.0
    %v1050 = vmax.f32 %v932, 0.0
    %v1051 = vmax.f32 %v937, 0.0
    %v1052 = vmax.f32 %v942, 0.0
    %v1053 = vmax.f32 %v947, 0.0
    %v1054 = vmax.f32 %v952, 0.0
    %v1055 = vmax.f32 %v957, 0.0
    %v1056 = vmax.f32 %v962, 0.0
    %v1057 = vmax.f32 %v967, 0.0
    %v1058 = vmax.f32 %v972, 0.0
    %v1059 = vmax.f32 %v977, 0.0
    %v1060 = vmax.f32 %v982, 0.0
    %v1061 = vmax.f32 %v987, 0.0
    %v1062 = vmax.f32 %v992, 0.0
    %v1063 = vmax.f32 %v997, 0.0
    %v1064 = vmax.f32 %v1002, 0.0
    %v1065 = vmax.f32 %v1007, 0.0
    %v1066 = vmax.f32 %v1012, 0.0
    %v1067 = vmax.f32 %v1017, 0.0
    %v1068 = vmax.f32 %v1022, 0.0
    %v1069 = vmax.f32 %v1027, 0.0
    %v1070 = vmax.f32 %v1032, 0.0
    %v1071 = vmax.f32 %v1037, 0.0
    %v1072 = vld [vmem:[%s3] sm:$0xff]
    %v1073 = vld [vmem:[%s3 + $0x8] sm:$0xff]
    %v1074 = vld [vmem:[%s3 + $0x10] sm:$0xff]
    %v1075 = vld [vmem:[%s3 + $0x18] sm:$0xff]
    %v1076 = vld [vmem:[%s3 + $0x20] sm:$0xff]
    %v1077 = vld [vmem:[%s3 + $0x28] sm:$0xff]
    %v1078 = vld [vmem:[%s3 + $0x30] sm:$0xff]
    %v1079 = vld [vmem:[%s3 + $0x38] sm:$0xff]
    %v1080 = vld [vmem:[%s3 + $0x40] sm:$0xff]
    %v1081 = vld [vmem:[%s3 + $0x48] sm:$0xff]
    %v1082 = vld [vmem:[%s3 + $0x50] sm:$0xff]
    %v1083 = vld [vmem:[%s3 + $0x58] sm:$0xff]
    %v1084 = vld [vmem:[%s3 + $0x60] sm:$0xff]
    %v1085 = vld [vmem:[%s3 + $0x68] sm:$0xff]
    %v1086 = vld [vmem:[%s3 + $0x70] sm:$0xff]
    %v1087 = vld [vmem:[%s3 + $0x78] sm:$0xff]
    %v1088 = vld [vmem:[%s3 + $0x80] sm:$0xff]
    %v1089 = vld [vmem:[%s3 + $0x88] sm:$0xff]
    %v1090 = vld [vmem:[%s3 + $0x90] sm:$0xff]
    %v1091 = vld [vmem:[%s3 + $0x98] sm:$0xff]
    %v1092 = vld [vmem:[%s3 + $0xa0] sm:$0xff]
    %v1093 = vld [vmem:[%s3 + $0xa8] sm:$0xff]
    %v1094 = vld [vmem:[%s3 + $0xb0] sm:$0xff]
    %v1095 = vld [vmem:[%s3 + $0xb8] sm:$0xff]
    %v1096 = vld [vmem:[%s3 + $0xc0] sm:$0xff]
    %v1097 = vld [vmem:[%s3 + $0xc8] sm:$0xff]
    %v1098 = vld [vmem:[%s3 + $0xd0] sm:$0xff]
    %v1099 = vld [vmem:[%s3 + $0xd8] sm:$0xff]
    %v1100 = vld [vmem:[%s3 + $0xe0] sm:$0xff]
    %v1101 = vld [vmem:[%s3 + $0xe8] sm:$0xff]
    %v1102 = vld [vmem:[%s3 + $0xf0] sm:$0xff]
    %v1103 = vld [vmem:[%s3 + $0xf8] sm:$0xff]
    %v1104 = vld [vmem:[%s3 + $0x100] sm:$0xff]
    %v1105 = vld [vmem:[%s3 + $0x108] sm:$0xff]
    %v1106 = vld [vmem:[%s3 + $0x110] sm:$0xff]
    %v1107 = vld [vmem:[%s3 + $0x118] sm:$0xff]
    %v1108 = vld [vmem:[%s3 + $0x120] sm:$0xff]
    %v1109 = vld [vmem:[%s3 + $0x128] sm:$0xff]
    %v1110 = vld [vmem:[%s3 + $0x130] sm:$0xff]
    %v1111 = vld [vmem:[%s3 + $0x138] sm:$0xff]
    %v1112 = vld [vmem:[%s3 + $0x140] sm:$0xff]
    %v1113 = vld [vmem:[%s3 + $0x148] sm:$0xff]
    %v1114 = vld [vmem:[%s3 + $0x150] sm:$0xff]
    %v1115 = vld [vmem:[%s3 + $0x158] sm:$0xff]
    %v1116 = vld [vmem:[%s3 + $0x160] sm:$0xff]
    %v1117 = vld [vmem:[%s3 + $0x168] sm:$0xff]
    %v1118 = vld [vmem:[%s3 + $0x170] sm:$0xff]
    %v1119 = vld [vmem:[%s3 + $0x178] sm:$0xff]
    %v1120 = vld [vmem:[%s3 + $0x180] sm:$0xff]
    %v1121 = vld [vmem:[%s3 + $0x188] sm:$0xff]
    %v1122 = vld [vmem:[%s3 + $0x190] sm:$0xff]
    %v1123 = vld [vmem:[%s3 + $0x198] sm:$0xff]
    %v1124 = vld [vmem:[%s3 + $0x1a0] sm:$0xff]
    %v1125 = vld [vmem:[%s3 + $0x1a8] sm:$0xff]
    %v1126 = vld [vmem:[%s3 + $0x1b0] sm:$0xff]
    %v1127 = vld [vmem:[%s3 + $0x1b8] sm:$0xff]
    %v1128 = vld [vmem:[%s3 + $0x1c0] sm:$0xff]
    %v1129 = vld [vmem:[%s3 + $0x1c8] sm:$0xff]
    %v1130 = vld [vmem:[%s3 + $0x1d0] sm:$0xff]
    %v1131 = vld [vmem:[%s3 + $0x1d8] sm:$0xff]
    %v1132 = vld [vmem:[%s3 + $0x1e0] sm:$0xff]
    %v1133 = vld [vmem:[%s3 + $0x1e8] sm:$0xff]
    %v1134 = vld [vmem:[%s3 + $0x1f0] sm:$0xff]
    %v1135 = vld [vmem:[%s3 + $0x1f8] sm:$0xff]
    %1136 = vset.pattern.permute.xlu0 2
    %1137 = vperm.xlu0 %1136, %v77
    %v1138 = vpop.permute.xlu0 %1137
    %1140 = vset.pattern.permute.xlu0 2
    %1141 = vperm.xlu0 %1140, %v78
    %v1142 = vpop.permute.xlu0 %1141
    %1144 = vset.pattern.permute.xlu0 2
    %1145 = vperm.xlu0 %1144, %v79
    %v1146 = vpop.permute.xlu0 %1145
    %1148 = vset.pattern.permute.xlu0 2
    %1149 = vperm.xlu0 %1148, %v80
    %v1150 = vpop.permute.xlu0 %1149
    %1152 = vset.pattern.permute.xlu0 2
    %1153 = vperm.xlu0 %1152, %v81
    %v1154 = vpop.permute.xlu0 %1153
    %1156 = vset.pattern.permute.xlu0 2
    %1157 = vperm.xlu0 %1156, %v82
    %v1158 = vpop.permute.xlu0 %1157
    %1160 = vset.pattern.permute.xlu0 2
    %1161 = vperm.xlu0 %1160, %v83
    %v1162 = vpop.permute.xlu0 %1161
    %1164 = vset.pattern.permute.xlu0 2
    %1165 = vperm.xlu0 %1164, %v84
    %v1166 = vpop.permute.xlu0 %1165
    %1168 = vset.pattern.permute.xlu0 2
    %1169 = vperm.xlu0 %1168, %v85
    %v1170 = vpop.permute.xlu0 %1169
    %1172 = vset.pattern.permute.xlu0 2
    %1173 = vperm.xlu0 %1172, %v86
    %v1174 = vpop.permute.xlu0 %1173
    %1176 = vset.pattern.permute.xlu0 2
    %1177 = vperm.xlu0 %1176, %v87
    %v1178 = vpop.permute.xlu0 %1177
    %1180 = vset.pattern.permute.xlu0 2
    %1181 = vperm.xlu0 %1180, %v88
    %v1182 = vpop.permute.xlu0 %1181
    %1184 = vset.pattern.permute.xlu0 2
    %1185 = vperm.xlu0 %1184, %v89
    %v1186 = vpop.permute.xlu0 %1185
    %1188 = vset.pattern.permute.xlu0 2
    %1189 = vperm.xlu0 %1188, %v90
    %v1190 = vpop.permute.xlu0 %1189
    %1192 = vset.pattern.permute.xlu0 2
    %1193 = vperm.xlu0 %1192, %v91
    %v1194 = vpop.permute.xlu0 %1193
    %1196 = vset.pattern.permute.xlu0 2
    %1197 = vperm.xlu0 %1196, %v92
    %v1198 = vpop.permute.xlu0 %1197
    %1200 = vset.pattern.permute.xlu0 2
    %1201 = vperm.xlu0 %1200, %v93
    %v1202 = vpop.permute.xlu0 %1201
    %1204 = vset.pattern.permute.xlu0 2
    %1205 = vperm.xlu0 %1204, %v94
    %v1206 = vpop.permute.xlu0 %1205
    %1208 = vset.pattern.permute.xlu0 2
    %1209 = vperm.xlu0 %1208, %v95
    %v1210 = vpop.permute.xlu0 %1209
    %1212 = vset.pattern.permute.xlu0 2
    %1213 = vperm.xlu0 %1212, %v96
    %v1214 = vpop.permute.xlu0 %1213
    %1216 = vset.pattern.permute.xlu0 2
    %1217 = vperm.xlu0 %1216, %v97
    %v1218 = vpop.permute.xlu0 %1217
    %1220 = vset.pattern.permute.xlu0 2
    %1221 = vperm.xlu0 %1220, %v98
    %v1222 = vpop.permute.xlu0 %1221
    %1224 = vset.pattern.permute.xlu0 2
    %1225 = vperm.xlu0 %1224, %v99
    %v1226 = vpop.permute.xlu0 %1225
    %1228 = vset.pattern.permute.xlu0 2
    %1229 = vperm.xlu0 %1228, %v100
    %v1230 = vpop.permute.xlu0 %1229
    %1232 = vset.pattern.permute.xlu0 2
    %1233 = vperm.xlu0 %1232, %v101
    %v1234 = vpop.permute.xlu0 %1233
    %1236 = vset.pattern.permute.xlu0 2
    %1237 = vperm.xlu0 %1236, %v102
    %v1238 = vpop.permute.xlu0 %1237
    %1240 = vset.pattern.permute.xlu0 2
    %1241 = vperm.xlu0 %1240, %v103
    %v1242 = vpop.permute.xlu0 %1241
    %1244 = vset.pattern.permute.xlu0 2
    %1245 = vperm.xlu0 %1244, %v104
    %v1246 = vpop.permute.xlu0 %1245
    %1248 = vset.pattern.permute.xlu0 2
    %1249 = vperm.xlu0 %1248, %v105
    %v1250 = vpop.permute.xlu0 %1249
    %1252 = vset.pattern.permute.xlu0 2
    %1253 = vperm.xlu0 %1252, %v106
    %v1254 = vpop.permute.xlu0 %1253
    %1256 = vset.pattern.permute.xlu0 2
    %1257 = vperm.xlu0 %1256, %v107
    %v1258 = vpop.permute.xlu0 %1257
    %1260 = vset.pattern.permute.xlu0 2
    %1261 = vperm.xlu0 %1260, %v108
    %v1262 = vpop.permute.xlu0 %1261
    %1264 = vmatprep.subr.mxu0 0.0
    %1265 = vmatpush1.msra.mxu0 %v1040
    %1266 = vmatprep.subr.mxu0 0.0
    %1267 = vmatpush1.msra.mxu0 %v1041
    %1268 = vmatprep.subr.mxu0 0.0
    %1269 = vmatpush1.msra.mxu0 %v1042
    %1270 = vmatprep.subr.mxu0 0.0
    %1271 = vmatpush1.msra.mxu0 %v1043
    %1272 = vmatprep.subr.mxu0 0.0
    %1273 = vmatpush1.msra.mxu0 %v1044
    %1274 = vmatprep.subr.mxu0 0.0
    %1275 = vmatpush1.msra.mxu0 %v1045
    %1276 = vmatprep.subr.mxu0 0.0
    %1277 = vmatpush1.msra.mxu0 %v1046
    %1278 = vmatprep.subr.mxu0 0.0
    %1279 = vmatpush1.msra.mxu0 %v1047
    %1280 = vmatprep.subr.mxu0 0.0
    %1281 = vmatpush1.msra.mxu0 %v1048
    %1282 = vmatprep.subr.mxu0 0.0
    %1283 = vmatpush1.msra.mxu0 %v1049
    %1284 = vmatprep.subr.mxu0 0.0
    %1285 = vmatpush1.msra.mxu0 %v1050
    %1286 = vmatprep.subr.mxu0 0.0
    %1287 = vmatpush1.msra.mxu0 %v1051
    %1288 = vmatprep.subr.mxu0 0.0
    %1289 = vmatpush1.msra.mxu0 %v1052
    %1290 = vmatprep.subr.mxu0 0.0
    %1291 = vmatpush1.msra.mxu0 %v1053
    %1292 = vmatprep.subr.mxu0 0.0
    %1293 = vmatpush1.msra.mxu0 %v1054
    %1294 = vmatprep.subr.mxu0 0.0
    %1295 = vmatpush1.msra.mxu0 %v1055
    %1296 = vmatprep.subr.mxu0 0.0
    %1297 = vmatpush1.msra.mxu0 %v1056
    %1298 = vmatprep.subr.mxu0 0.0
    %1299 = vmatpush1.msra.mxu0 %v1057
    %1300 = vmatprep.subr.mxu0 0.0
    %1301 = vmatpush1.msra.mxu0 %v1058
    %1302 = vmatprep.subr.mxu0 0.0
    %1303 = vmatpush1.msra.mxu0 %v1059
    %1304 = vmatprep.subr.mxu0 0.0
    %1305 = vmatpush1.msra.mxu0 %v1060
    %1306 = vmatprep.subr.mxu0 0.0
    %1307 = vmatpush1.msra.mxu0 %v1061
    %1308 = vmatprep.subr.mxu0 0.0
    %1309 = vmatpush1.msra.mxu0 %v1062
    %1310 = vmatprep.subr.mxu0 0.0
    %1311 = vmatpush1.msra.mxu0 %v1063
    %1312 = vmatprep.subr.mxu0 0.0
    %1313 = vmatpush1.msra.mxu0 %v1064
    %1314 = vmatprep.subr.mxu0 0.0
    %1315 = vmatpush1.msra.mxu0 %v1065
    %1316 = vmatprep.subr.mxu0 0.0
    %1317 = vmatpush1.msra.mxu0 %v1066
    %1318 = vmatprep.subr.mxu0 0.0
    %1319 = vmatpush1.msra.mxu0 %v1067
    %1320 = vmatprep.subr.mxu0 0.0
    %1321 = vmatpush1.msra.mxu0 %v1068
    %1322 = vmatprep.subr.mxu0 0.0
    %1323 = vmatpush1.msra.mxu0 %v1069
    %1324 = vmatprep.subr.mxu0 0.0
    %1325 = vmatpush1.msra.mxu0 %v1070
    %1326 = vmatprep.subr.mxu0 0.0
    %1327 = vmatpush1.msra.mxu0 %v1071
    %1328 = vmatprep.mubr.f32.mxu0 %v1073
    %1329 = vmatmul.mubr.f32.gmra.mrb[0].mxu0 %v1072
    %v1330 = vpop.f32.mrb[0].mxu0
    %v1331 = vadd.f32 %v1138, %v1330
    %v1332 = vpop.f32.mrb[0].mxu0
    %1333 = vmatprep.mubr.f32.mxu0 %v1075
    %1334 = vmatmul.mubr.f32.gmra.mrb[0].mxu0 %v1074
    %v1335 = vpop.f32.mrb[0].mxu0
    %v1336 = vadd.f32 %v1142, %v1335
    %v1337 = vpop.f32.mrb[0].mxu0
    %1338 = vmatprep.mubr.f32.mxu0 %v1077
    %1339 = vmatmul.mubr.f32.gmra.mrb[0].mxu0 %v1076
    %v1340 = vpop.f32.mrb[0].mxu0
    %v1341 = vadd.f32 %v1146, %v1340
    %v1342 = vpop.f32.mrb[0].mxu0
    %1343 = vmatprep.mubr.f32.mxu0 %v1079
    %1344 = vmatmul.mubr.f32.gmra.mrb[0].mxu0 %v1078
    %v1345 = vpop.f32.mrb[0].mxu0
    %v1346 = vadd.f32 %v1150, %v1345
    %v1347 = vpop.f32.mrb[0].mxu0
    %1348 = vmatprep.mubr.f32.mxu0 %v1081
    %1349 = vmatmul.mubr.f32.gmra.mrb[0].mxu0 %v1080
    %v1350 = vpop.f32.mrb[0].mxu0
    %v1351 = vadd.f32 %v1154, %v1350
    %v1352 = vpop.f32.mrb[0].mxu0
    %1353 = vmatprep.mubr.f32.mxu0 %v1083
    %1354 = vmatmul.mubr.f32.gmra.mrb[0].mxu0 %v1082
    %v1355 = vpop.f32.mrb[0].mxu0
    %v1356 = vadd.f32 %v1158, %v1355
    %v1357 = vpop.f32.mrb[0].mxu0
    %1358 = vmatprep.mubr.f32.mxu0 %v1085
    %1359 = vmatmul.mubr.f32.gmra.mrb[0].mxu0 %v1084
    %v1360 = vpop.f32.mrb[0].mxu0
    %v1361 = vadd.f32 %v1162, %v1360
    %v1362 = vpop.f32.mrb[0].mxu0
    %1363 = vmatprep.mubr.f32.mxu0 %v1087
    %1364 = vmatmul.mubr.f32.gmra.mrb[0].mxu0 %v1086
    %v1365 = vpop.f32.mrb[0].mxu0
    %v1366 = vadd.f32 %v1166, %v1365
    %v1367 = vpop.f32.mrb[0].mxu0
    %1368 = vmatprep.mubr.f32.mxu0 %v1089
    %1369 = vmatmul.mubr.f32.gmra.mrb[0].mxu0 %v1088
    %v1370 = vpop.f32.mrb[0].mxu0
    %v1371 = vadd.f32 %v1170, %v1370
    %v1372 = vpop.f32.mrb[0].mxu0
    %1373 = vmatprep.mubr.f32.mxu0 %v1091
    %1374 = vmatmul.mubr.f32.gmra.mrb[0].mxu0 %v1090
    %v1375 = vpop.f32.mrb[0].mxu0
    %v1376 = vadd.f32 %v1174, %v1375
    %v1377 = vpop.f32.mrb[0].mxu0
    %1378 = vmatprep.mubr.f32.mxu0 %v1093
    %1379 = vmatmul.mubr.f32.gmra.mrb[0].mxu0 %v1092
    %v1380 = vpop.f32.mrb[0].mxu0
    %v1381 = vadd.f32 %v1178, %v1380
    %v1382 = vpop.f32.mrb[0].mxu0
    %1383 = vmatprep.mubr.f32.mxu0 %v1095
    %1384 = vmatmul.mubr.f32.gmra.mrb[0].mxu0 %v1094
    %v1385 = vpop.f32.mrb[0].mxu0
    %v1386 = vadd.f32 %v1182, %v1385
    %v1387 = vpop.f32.mrb[0].mxu0
    %1388 = vmatprep.mubr.f32.mxu0 %v1097
    %1389 = vmatmul.mubr.f32.gmra.mrb[0].mxu0 %v1096
    %v1390 = vpop.f32.mrb[0].mxu0
    %v1391 = vadd.f32 %v1186, %v1390
    %v1392 = vpop.f32.mrb[0].mxu0
    %1393 = vmatprep.mubr.f32.mxu0 %v1099
    %1394 = vmatmul.mubr.f32.gmra.mrb[0].mxu0 %v1098
    %v1395 = vpop.f32.mrb[0].mxu0
    %v1396 = vadd.f32 %v1190, %v1395
    %v1397 = vpop.f32.mrb[0].mxu0
    %1398 = vmatprep.mubr.f32.mxu0 %v1101
    %1399 = vmatmul.mubr.f32.gmra.mrb[0].mxu0 %v1100
    %v1400 = vpop.f32.mrb[0].mxu0
    %v1401 = vadd.f32 %v1194, %v1400
    %v1402 = vpop.f32.mrb[0].mxu0
    %1403 = vmatprep.mubr.f32.mxu0 %v1103
    %1404 = vmatmul.mubr.f32.gmra.mrb[0].mxu0 %v1102
    %v1405 = vpop.f32.mrb[0].mxu0
    %v1406 = vadd.f32 %v1198, %v1405
    %v1407 = vpop.f32.mrb[0].mxu0
    %1408 = vmatprep.mubr.f32.mxu0 %v1105
    %1409 = vmatmul.mubr.f32.gmra.mrb[0].mxu0 %v1104
    %v1410 = vpop.f32.mrb[0].mxu0
    %v1411 = vadd.f32 %v1202, %v1410
    %v1412 = vpop.f32.mrb[0].mxu0
    %1413 = vmatprep.mubr.f32.mxu0 %v1107
    %1414 = vmatmul.mubr.f32.gmra.mrb[0].mxu0 %v1106
    %v1415 = vpop.f32.mrb[0].mxu0
    %v1416 = vadd.f32 %v1206, %v1415
    %v1417 = vpop.f32.mrb[0].mxu0
    %1418 = vmatprep.mubr.f32.mxu0 %v1109
    %1419 = vmatmul.mubr.f32.gmra.mrb[0].mxu0 %v1108
    %v1420 = vpop.f32.mrb[0].mxu0
    %v1421 = vadd.f32 %v1210, %v1420
    %v1422 = vpop.f32.mrb[0].mxu0
    %1423 = vmatprep.mubr.f32.mxu0 %v1111
    %1424 = vmatmul.mubr.f32.gmra.mrb[0].mxu0 %v1110
    %v1425 = vpop.f32.mrb[0].mxu0
    %v1426 = vadd.f32 %v1214, %v1425
    %v1427 = vpop.f32.mrb[0].mxu0
    %1428 = vmatprep.mubr.f32.mxu0 %v1113
    %1429 = vmatmul.mubr.f32.gmra.mrb[0].mxu0 %v1112
    %v1430 = vpop.f32.mrb[0].mxu0
    %v1431 = vadd.f32 %v1218, %v1430
    %v1432 = vpop.f32.mrb[0].mxu0
    %1433 = vmatprep.mubr.f32.mxu0 %v1115
    %1434 = vmatmul.mubr.f32.gmra.mrb[0].mxu0 %v1114
    %v1435 = vpop.f32.mrb[0].mxu0
    %v1436 = vadd.f32 %v1222, %v1435
    %v1437 = vpop.f32.mrb[0].mxu0
    %1438 = vmatprep.mubr.f32.mxu0 %v1117
    %1439 = vmatmul.mubr.f32.gmra.mrb[0].mxu0 %v1116
    %v1440 = vpop.f32.mrb[0].mxu0
    %v1441 = vadd.f32 %v1226, %v1440
    %v1442 = vpop.f32.mrb[0].mxu0
    %1443 = vmatprep.mubr.f32.mxu0 %v1119
    %1444 = vmatmul.mubr.f32.gmra.mrb[0].mxu0 %v1118
    %v1445 = vpop.f32.mrb[0].mxu0
    %v1446 = vadd.f32 %v1230, %v1445
    %v1447 = vpop.f32.mrb[0].mxu0
    %1448 = vmatprep.mubr.f32.mxu0 %v1121
    %1449 = vmatmul.mubr.f32.gmra.mrb[0].mxu0 %v1120
    %v1450 = vpop.f32.mrb[0].mxu0
    %v1451 = vadd.f32 %v1234, %v1450
    %v1452 = vpop.f32.mrb[0].mxu0
    %1453 = vmatprep.mubr.f32.mxu0 %v1123
    %1454 = vmatmul.mubr.f32.gmra.mrb[0].mxu0 %v1122
    %v1455 = vpop.f32.mrb[0].mxu0
    %v1456 = vadd.f32 %v1238, %v1455
    %v1457 = vpop.f32.mrb[0].mxu0
    %1458 = vmatprep.mubr.f32.mxu0 %v1125
    %1459 = vmatmul.mubr.f32.gmra.mrb[0].mxu0 %v1124
    %v1460 = vpop.f32.mrb[0].mxu0
    %v1461 = vadd.f32 %v1242, %v1460
    %v1462 = vpop.f32.mrb[0].mxu0
    %1463 = vmatprep.mubr.f32.mxu0 %v1127
    %1464 = vmatmul.mubr.f32.gmra.mrb[0].mxu0 %v1126
    %v1465 = vpop.f32.mrb[0].mxu0
    %v1466 = vadd.f32 %v1246, %v1465
    %v1467 = vpop.f32.mrb[0].mxu0
    %1468 = vmatprep.mubr.f32.mxu0 %v1129
    %1469 = vmatmul.mubr.f32.gmra.mrb[0].mxu0 %v1128
    %v1470 = vpop.f32.mrb[0].mxu0
    %v1471 = vadd.f32 %v1250, %v1470
    %v1472 = vpop.f32.mrb[0].mxu0
    %1473 = vmatprep.mubr.f32.mxu0 %v1131
    %1474 = vmatmul.mubr.f32.gmra.mrb[0].mxu0 %v1130
    %v1475 = vpop.f32.mrb[0].mxu0
    %v1476 = vadd.f32 %v1254, %v1475
    %v1477 = vpop.f32.mrb[0].mxu0
    %1478 = vmatprep.mubr.f32.mxu0 %v1133
    %1479 = vmatmul.mubr.f32.gmra.mrb[0].mxu0 %v1132
    %v1480 = vpop.f32.mrb[0].mxu0
    %v1481 = vadd.f32 %v1258, %v1480
    %v1482 = vpop.f32.mrb[0].mxu0
    %1483 = vmatprep.mubr.f32.mxu0 %v1135
    %1484 = vmatmul.mubr.f32.gmra.mrb[0].mxu0 %v1134
    %v1485 = vpop.f32.mrb[0].mxu0
    %v1486 = vadd.f32 %v1262, %v1485
    %v1487 = vpop.f32.mrb[0].mxu0
    %1488 = vdwg.mxu0
    %v1489 = vmax.f32 %v1331, 0.0
    %v1490 = vmax.f32 %v1336, 0.0
    %v1491 = vmax.f32 %v1341, 0.0
    %v1492 = vmax.f32 %v1346, 0.0
    %v1493 = vmax.f32 %v1351, 0.0
    %v1494 = vmax.f32 %v1356, 0.0
    %v1495 = vmax.f32 %v1361, 0.0
    %v1496 = vmax.f32 %v1366, 0.0
    %v1497 = vmax.f32 %v1371, 0.0
    %v1498 = vmax.f32 %v1376, 0.0
    %v1499 = vmax.f32 %v1381, 0.0
    %v1500 = vmax.f32 %v1386, 0.0
    %v1501 = vmax.f32 %v1391, 0.0
    %v1502 = vmax.f32 %v1396, 0.0
    %v1503 = vmax.f32 %v1401, 0.0
    %v1504 = vmax.f32 %v1406, 0.0
    %v1505 = vmax.f32 %v1411, 0.0
    %v1506 = vmax.f32 %v1416, 0.0
    %v1507 = vmax.f32 %v1421, 0.0
    %v1508 = vmax.f32 %v1426, 0.0
    %v1509 = vmax.f32 %v1431, 0.0
    %v1510 = vmax.f32 %v1436, 0.0
    %v1511 = vmax.f32 %v1441, 0.0
    %v1512 = vmax.f32 %v1446, 0.0
    %v1513 = vmax.f32 %v1451, 0.0
    %v1514 = vmax.f32 %v1456, 0.0
    %v1515 = vmax.f32 %v1461, 0.0
    %v1516 = vmax.f32 %v1466, 0.0
    %v1517 = vmax.f32 %v1471, 0.0
    %v1518 = vmax.f32 %v1476, 0.0
    %v1519 = vmax.f32 %v1481, 0.0
    %v1520 = vmax.f32 %v1486, 0.0
    %v1521 = vld [vmem:[#allocation2] sm:$0xff]
    %v1522 = vld [vmem:[#allocation2 + $0x8] sm:$0xff]
    %v1523 = vld [vmem:[#allocation2 + $0x10] sm:$0xff]
    %v1524 = vld [vmem:[#allocation2 + $0x18] sm:$0xff]
    %v1525 = vld [vmem:[#allocation2 + $0x20] sm:$0xff]
    %v1526 = vld [vmem:[#allocation2 + $0x28] sm:$0xff]
    %v1527 = vld [vmem:[#allocation2 + $0x30] sm:$0xff]
    %v1528 = vld [vmem:[#allocation2 + $0x38] sm:$0xff]
    %v1529 = vld [vmem:[#allocation2 + $0x40] sm:$0xff]
    %v1530 = vld [vmem:[#allocation2 + $0x48] sm:$0xff]
    %v1531 = vld [vmem:[#allocation2 + $0x50] sm:$0xff]
    %v1532 = vld [vmem:[#allocation2 + $0x58] sm:$0xff]
    %v1533 = vld [vmem:[#allocation2 + $0x60] sm:$0xff]
    %v1534 = vld [vmem:[#allocation2 + $0x68] sm:$0xff]
    %v1535 = vld [vmem:[#allocation2 + $0x70] sm:$0xff]
    %v1536 = vld [vmem:[#allocation2 + $0x78] sm:$0xff]
    %v1537 = vld [vmem:[#allocation2 + $0x80] sm:$0xff]
    %v1538 = vld [vmem:[#allocation2 + $0x88] sm:$0xff]
    %v1539 = vld [vmem:[#allocation2 + $0x90] sm:$0xff]
    %v1540 = vld [vmem:[#allocation2 + $0x98] sm:$0xff]
    %v1541 = vld [vmem:[#allocation2 + $0xa0] sm:$0xff]
    %v1542 = vld [vmem:[#allocation2 + $0xa8] sm:$0xff]
    %v1543 = vld [vmem:[#allocation2 + $0xb0] sm:$0xff]
    %v1544 = vld [vmem:[#allocation2 + $0xb8] sm:$0xff]
    %v1545 = vld [vmem:[#allocation2 + $0xc0] sm:$0xff]
    %v1546 = vld [vmem:[#allocation2 + $0xc8] sm:$0xff]
    %v1547 = vld [vmem:[#allocation2 + $0xd0] sm:$0xff]
    %v1548 = vld [vmem:[#allocation2 + $0xd8] sm:$0xff]
    %v1549 = vld [vmem:[#allocation2 + $0xe0] sm:$0xff]
    %v1550 = vld [vmem:[#allocation2 + $0xe8] sm:$0xff]
    %v1551 = vld [vmem:[#allocation2 + $0xf0] sm:$0xff]
    %v1552 = vld [vmem:[#allocation2 + $0xf8] sm:$0xff]
    %v1553 = vld [vmem:[#allocation2 + $0x100] sm:$0xff]
    %v1554 = vld [vmem:[#allocation2 + $0x108] sm:$0xff]
    %v1555 = vld [vmem:[#allocation2 + $0x110] sm:$0xff]
    %v1556 = vld [vmem:[#allocation2 + $0x118] sm:$0xff]
    %v1557 = vld [vmem:[#allocation2 + $0x120] sm:$0xff]
    %v1558 = vld [vmem:[#allocation2 + $0x128] sm:$0xff]
    %v1559 = vld [vmem:[#allocation2 + $0x130] sm:$0xff]
    %v1560 = vld [vmem:[#allocation2 + $0x138] sm:$0xff]
    %v1561 = vld [vmem:[#allocation2 + $0x140] sm:$0xff]
    %v1562 = vld [vmem:[#allocation2 + $0x148] sm:$0xff]
    %v1563 = vld [vmem:[#allocation2 + $0x150] sm:$0xff]
    %v1564 = vld [vmem:[#allocation2 + $0x158] sm:$0xff]
    %v1565 = vld [vmem:[#allocation2 + $0x160] sm:$0xff]
    %v1566 = vld [vmem:[#allocation2 + $0x168] sm:$0xff]
    %v1567 = vld [vmem:[#allocation2 + $0x170] sm:$0xff]
    %v1568 = vld [vmem:[#allocation2 + $0x178] sm:$0xff]
    %v1569 = vld [vmem:[#allocation2 + $0x180] sm:$0xff]
    %v1570 = vld [vmem:[#allocation2 + $0x188] sm:$0xff]
    %v1571 = vld [vmem:[#allocation2 + $0x190] sm:$0xff]
    %v1572 = vld [vmem:[#allocation2 + $0x198] sm:$0xff]
    %v1573 = vld [vmem:[#allocation2 + $0x1a0] sm:$0xff]
    %v1574 = vld [vmem:[#allocation2 + $0x1a8] sm:$0xff]
    %v1575 = vld [vmem:[#allocation2 + $0x1b0] sm:$0xff]
    %v1576 = vld [vmem:[#allocation2 + $0x1b8] sm:$0xff]
    %v1577 = vld [vmem:[#allocation2 + $0x1c0] sm:$0xff]
    %v1578 = vld [vmem:[#allocation2 + $0x1c8] sm:$0xff]
    %v1579 = vld [vmem:[#allocation2 + $0x1d0] sm:$0xff]
    %v1580 = vld [vmem:[#allocation2 + $0x1d8] sm:$0xff]
    %v1581 = vld [vmem:[#allocation2 + $0x1e0] sm:$0xff]
    %v1582 = vld [vmem:[#allocation2 + $0x1e8] sm:$0xff]
    %v1583 = vld [vmem:[#allocation2 + $0x1f0] sm:$0xff]
    %v1584 = vld [vmem:[#allocation2 + $0x1f8] sm:$0xff]
    %1585 = vset.pattern.permute.xlu0 3
    %1586 = vperm.xlu0 %1585, %v77
    %v1587 = vpop.permute.xlu0 %1586
    %1589 = vset.pattern.permute.xlu0 3
    %1590 = vperm.xlu0 %1589, %v78
    %v1591 = vpop.permute.xlu0 %1590
    %1593 = vset.pattern.permute.xlu0 3
    %1594 = vperm.xlu0 %1593, %v79
    %v1595 = vpop.permute.xlu0 %1594
    %1597 = vset.pattern.permute.xlu0 3
    %1598 = vperm.xlu0 %1597, %v80
    %v1599 = vpop.permute.xlu0 %1598
    %1601 = vset.pattern.permute.xlu0 3
    %1602 = vperm.xlu0 %1601, %v81
    %v1603 = vpop.permute.xlu0 %1602
    %1605 = vset.pattern.permute.xlu0 3
    %1606 = vperm.xlu0 %1605, %v82
    %v1607 = vpop.permute.xlu0 %1606
    %1609 = vset.pattern.permute.xlu0 3
    %1610 = vperm.xlu0 %1609, %v83
    %v1611 = vpop.permute.xlu0 %1610
    %1613 = vset.pattern.permute.xlu0 3
    %1614 = vperm.xlu0 %1613, %v84
    %v1615 = vpop.permute.xlu0 %1614
    %1617 = vset.pattern.permute.xlu0 3
    %1618 = vperm.xlu0 %1617, %v85
    %v1619 = vpop.permute.xlu0 %1618
    %1621 = vset.pattern.permute.xlu0 3
    %1622 = vperm.xlu0 %1621, %v86
    %v1623 = vpop.permute.xlu0 %1622
    %1625 = vset.pattern.permute.xlu0 3
    %1626 = vperm.xlu0 %1625, %v87
    %v1627 = vpop.permute.xlu0 %1626
    %1629 = vset.pattern.permute.xlu0 3
    %1630 = vperm.xlu0 %1629, %v88
    %v1631 = vpop.permute.xlu0 %1630
    %1633 = vset.pattern.permute.xlu0 3
    %1634 = vperm.xlu0 %1633, %v89
    %v1635 = vpop.permute.xlu0 %1634
    %1637 = vset.pattern.permute.xlu0 3
    %1638 = vperm.xlu0 %1637, %v90
    %v1639 = vpop.permute.xlu0 %1638
    %1641 = vset.pattern.permute.xlu0 3
    %1642 = vperm.xlu0 %1641, %v91
    %v1643 = vpop.permute.xlu0 %1642
    %1645 = vset.pattern.permute.xlu0 3
    %1646 = vperm.xlu0 %1645, %v92
    %v1647 = vpop.permute.xlu0 %1646
    %1649 = vset.pattern.permute.xlu0 3
    %1650 = vperm.xlu0 %1649, %v93
    %v1651 = vpop.permute.xlu0 %1650
    %1653 = vset.pattern.permute.xlu0 3
    %1654 = vperm.xlu0 %1653, %v94
    %v1655 = vpop.permute.xlu0 %1654
    %1657 = vset.pattern.permute.xlu0 3
    %1658 = vperm.xlu0 %1657, %v95
    %v1659 = vpop.permute.xlu0 %1658
    %1661 = vset.pattern.permute.xlu0 3
    %1662 = vperm.xlu0 %1661, %v96
    %v1663 = vpop.permute.xlu0 %1662
    %1665 = vset.pattern.permute.xlu0 3
    %1666 = vperm.xlu0 %1665, %v97
    %v1667 = vpop.permute.xlu0 %1666
    %1669 = vset.pattern.permute.xlu0 3
    %1670 = vperm.xlu0 %1669, %v98
    %v1671 = vpop.permute.xlu0 %1670
    %1673 = vset.pattern.permute.xlu0 3
    %1674 = vperm.xlu0 %1673, %v99
    %v1675 = vpop.permute.xlu0 %1674
    %1677 = vset.pattern.permute.xlu0 3
    %1678 = vperm.xlu0 %1677, %v100
    %v1679 = vpop.permute.xlu0 %1678
    %1681 = vset.pattern.permute.xlu0 3
    %1682 = vperm.xlu0 %1681, %v101
    %v1683 = vpop.permute.xlu0 %1682
    %1685 = vset.pattern.permute.xlu0 3
    %1686 = vperm.xlu0 %1685, %v102
    %v1687 = vpop.permute.xlu0 %1686
    %1689 = vset.pattern.permute.xlu0 3
    %1690 = vperm.xlu0 %1689, %v103
    %v1691 = vpop.permute.xlu0 %1690
    %1693 = vset.pattern.permute.xlu0 3
    %1694 = vperm.xlu0 %1693, %v104
    %v1695 = vpop.permute.xlu0 %1694
    %1697 = vset.pattern.permute.xlu0 3
    %1698 = vperm.xlu0 %1697, %v105
    %v1699 = vpop.permute.xlu0 %1698
    %1701 = vset.pattern.permute.xlu0 3
    %1702 = vperm.xlu0 %1701, %v106
    %v1703 = vpop.permute.xlu0 %1702
    %1705 = vset.pattern.permute.xlu0 3
    %1706 = vperm.xlu0 %1705, %v107
    %v1707 = vpop.permute.xlu0 %1706
    %1709 = vset.pattern.permute.xlu0 3
    %1710 = vperm.xlu0 %1709, %v108
    %v1711 = vpop.permute.xlu0 %1710
    %1713 = vmatprep.subr.mxu0 0.0
    %1714 = vmatpush1.msra.mxu0 %v1489
    %1715 = vmatprep.subr.mxu0 0.0
    %1716 = vmatpush1.msra.mxu0 %v1490
    %1717 = vmatprep.subr.mxu0 0.0
    %1718 = vmatpush1.msra.mxu0 %v1491
    %1719 = vmatprep.subr.mxu0 0.0
    %1720 = vmatpush1.msra.mxu0 %v1492
    %1721 = vmatprep.subr.mxu0 0.0
    %1722 = vmatpush1.msra.mxu0 %v1493
    %1723 = vmatprep.subr.mxu0 0.0
    %1724 = vmatpush1.msra.mxu0 %v1494
    %1725 = vmatprep.subr.mxu0 0.0
    %1726 = vmatpush1.msra.mxu0 %v1495
    %1727 = vmatprep.subr.mxu0 0.0
    %1728 = vmatpush1.msra.mxu0 %v1496
    %1729 = vmatprep.subr.mxu0 0.0
    %1730 = vmatpush1.msra.mxu0 %v1497
    %1731 = vmatprep.subr.mxu0 0.0
    %1732 = vmatpush1.msra.mxu0 %v1498
    %1733 = vmatprep.subr.mxu0 0.0
    %1734 = vmatpush1.msra.mxu0 %v1499
    %1735 = vmatprep.subr.mxu0 0.0
    %1736 = vmatpush1.msra.mxu0 %v1500
    %1737 = vmatprep.subr.mxu0 0.0
    %1738 = vmatpush1.msra.mxu0 %v1501
    %1739 = vmatprep.subr.mxu0 0.0
    %1740 = vmatpush1.msra.mxu0 %v1502
    %1741 = vmatprep.subr.mxu0 0.0
    %1742 = vmatpush1.msra.mxu0 %v1503
    %1743 = vmatprep.subr.mxu0 0.0
    %1744 = vmatpush1.msra.mxu0 %v1504
    %1745 = vmatprep.subr.mxu0 0.0
    %1746 = vmatpush1.msra.mxu0 %v1505
    %1747 = vmatprep.subr.mxu0 0.0
    %1748 = vmatpush1.msra.mxu0 %v1506
    %1749 = vmatprep.subr.mxu0 0.0
    %1750 = vmatpush1.msra.mxu0 %v1507
    %1751 = vmatprep.subr.mxu0 0.0
    %1752 = vmatpush1.msra.mxu0 %v1508
    %1753 = vmatprep.subr.mxu0 0.0
    %1754 = vmatpush1.msra.mxu0 %v1509
    %1755 = vmatprep.subr.mxu0 0.0
    %1756 = vmatpush1.msra.mxu0 %v1510
    %1757 = vmatprep.subr.mxu0 0.0
    %1758 = vmatpush1.msra.mxu0 %v1511
    %1759 = vmatprep.subr.mxu0 0.0
    %1760 = vmatpush1.msra.mxu0 %v1512
    %1761 = vmatprep.subr.mxu0 0.0
    %1762 = vmatpush1.msra.mxu0 %v1513
    %1763 = vmatprep.subr.mxu0 0.0
    %1764 = vmatpush1.msra.mxu0 %v1514
    %1765 = vmatprep.subr.mxu0 0.0
    %1766 = vmatpush1.msra.mxu0 %v1515
    %1767 = vmatprep.subr.mxu0 0.0
    %1768 = vmatpush1.msra.mxu0 %v1516
    %1769 = vmatprep.subr.mxu0 0.0
    %1770 = vmatpush1.msra.mxu0 %v1517
    %1771 = vmatprep.subr.mxu0 0.0
    %1772 = vmatpush1.msra.mxu0 %v1518
    %1773 = vmatprep.subr.mxu0 0.0
    %1774 = vmatpush1.msra.mxu0 %v1519
    %1775 = vmatprep.subr.mxu0 0.0
    %1776 = vmatpush1.msra.mxu0 %v1520
    %1777 = vmatprep.mubr.f32.mxu0 %v1522
    %1778 = vmatmul.mubr.f32.gmra.mrb[0].mxu0 %v1521
    %v1779 = vpop.f32.mrb[0].mxu0
    %v1780 = vadd.f32 %v1587, %v1779
    %v1781 = vpop.f32.mrb[0].mxu0
    %1782 = vmatprep.mubr.f32.mxu0 %v1524
    %1783 = vmatmul.mubr.f32.gmra.mrb[0].mxu0 %v1523
    %v1784 = vpop.f32.mrb[0].mxu0
    %v1785 = vadd.f32 %v1591, %v1784
    %v1786 = vpop.f32.mrb[0].mxu0
    %1787 = vmatprep.mubr.f32.mxu0 %v1526
    %1788 = vmatmul.mubr.f32.gmra.mrb[0].mxu0 %v1525
    %v1789 = vpop.f32.mrb[0].mxu0
    %v1790 = vadd.f32 %v1595, %v1789
    %v1791 = vpop.f32.mrb[0].mxu0
    %1792 = vmatprep.mubr.f32.mxu0 %v1528
    %1793 = vmatmul.mubr.f32.gmra.mrb[0].mxu0 %v1527
    %v1794 = vpop.f32.mrb[0].mxu0
    %v1795 = vadd.f32 %v1599, %v1794
    %v1796 = vpop.f32.mrb[0].mxu0
    %1797 = vmatprep.mubr.f32.mxu0 %v1530
    %1798 = vmatmul.mubr.f32.gmra.mrb[0].mxu0 %v1529
    %v1799 = vpop.f32.mrb[0].mxu0
    %v1800 = vadd.f32 %v1603, %v1799
    %v1801 = vpop.f32.mrb[0].mxu0
    %1802 = vmatprep.mubr.f32.mxu0 %v1532
    %1803 = vmatmul.mubr.f32.gmra.mrb[0].mxu0 %v1531
    %v1804 = vpop.f32.mrb[0].mxu0
    %v1805 = vadd.f32 %v1607, %v1804
    %v1806 = vpop.f32.mrb[0].mxu0
    %1807 = vmatprep.mubr.f32.mxu0 %v1534
    %1808 = vmatmul.mubr.f32.gmra.mrb[0].mxu0 %v1533
    %v1809 = vpop.f32.mrb[0].mxu0
    %v1810 = vadd.f32 %v1611, %v1809
    %v1811 = vpop.f32.mrb[0].mxu0
    %1812 = vmatprep.mubr.f32.mxu0 %v1536
    %1813 = vmatmul.mubr.f32.gmra.mrb[0].mxu0 %v1535
    %v1814 = vpop.f32.mrb[0].mxu0
    %v1815 = vadd.f32 %v1615, %v1814
    %v1816 = vpop.f32.mrb[0].mxu0
    %1817 = vmatprep.mubr.f32.mxu0 %v1538
    %1818 = vmatmul.mubr.f32.gmra.mrb[0].mxu0 %v1537
    %v1819 = vpop.f32.mrb[0].mxu0
    %v1820 = vadd.f32 %v1619, %v1819
    %v1821 = vpop.f32.mrb[0].mxu0
    %1822 = vmatprep.mubr.f32.mxu0 %v1540
    %1823 = vmatmul.mubr.f32.gmra.mrb[0].mxu0 %v1539
    %v1824 = vpop.f32.mrb[0].mxu0
    %v1825 = vadd.f32 %v1623, %v1824
    %v1826 = vpop.f32.mrb[0].mxu0
    %1827 = vmatprep.mubr.f32.mxu0 %v1542
    %1828 = vmatmul.mubr.f32.gmra.mrb[0].mxu0 %v1541
    %v1829 = vpop.f32.mrb[0].mxu0
    %v1830 = vadd.f32 %v1627, %v1829
    %v1831 = vpop.f32.mrb[0].mxu0
    %1832 = vmatprep.mubr.f32.mxu0 %v1544
    %1833 = vmatmul.mubr.f32.gmra.mrb[0].mxu0 %v1543
    %v1834 = vpop.f32.mrb[0].mxu0
    %v1835 = vadd.f32 %v1631, %v1834
    %v1836 = vpop.f32.mrb[0].mxu0
    %1837 = vmatprep.mubr.f32.mxu0 %v1546
    %1838 = vmatmul.mubr.f32.gmra.mrb[0].mxu0 %v1545
    %v1839 = vpop.f32.mrb[0].mxu0
    %v1840 = vadd.f32 %v1635, %v1839
    %v1841 = vpop.f32.mrb[0].mxu0
    %1842 = vmatprep.mubr.f32.mxu0 %v1548
    %1843 = vmatmul.mubr.f32.gmra.mrb[0].mxu0 %v1547
    %v1844 = vpop.f32.mrb[0].mxu0
    %v1845 = vadd.f32 %v1639, %v1844
    %v1846 = vpop.f32.mrb[0].mxu0
    %1847 = vmatprep.mubr.f32.mxu0 %v1550
    %1848 = vmatmul.mubr.f32.gmra.mrb[0].mxu0 %v1549
    %v1849 = vpop.f32.mrb[0].mxu0
    %v1850 = vadd.f32 %v1643, %v1849
    %v1851 = vpop.f32.mrb[0].mxu0
    %1852 = vmatprep.mubr.f32.mxu0 %v1552
    %1853 = vmatmul.mubr.f32.gmra.mrb[0].mxu0 %v1551
    %v1854 = vpop.f32.mrb[0].mxu0
    %v1855 = vadd.f32 %v1647, %v1854
    %v1856 = vpop.f32.mrb[0].mxu0
    %1857 = vmatprep.mubr.f32.mxu0 %v1554
    %1858 = vmatmul.mubr.f32.gmra.mrb[0].mxu0 %v1553
    %v1859 = vpop.f32.mrb[0].mxu0
    %v1860 = vadd.f32 %v1651, %v1859
    %v1861 = vpop.f32.mrb[0].mxu0
    %1862 = vmatprep.mubr.f32.mxu0 %v1556
    %1863 = vmatmul.mubr.f32.gmra.mrb[0].mxu0 %v1555
    %v1864 = vpop.f32.mrb[0].mxu0
    %v1865 = vadd.f32 %v1655, %v1864
    %v1866 = vpop.f32.mrb[0].mxu0
    %1867 = vmatprep.mubr.f32.mxu0 %v1558
    %1868 = vmatmul.mubr.f32.gmra.mrb[0].mxu0 %v1557
    %v1869 = vpop.f32.mrb[0].mxu0
    %v1870 = vadd.f32 %v1659, %v1869
    %v1871 = vpop.f32.mrb[0].mxu0
    %1872 = vmatprep.mubr.f32.mxu0 %v1560
    %1873 = vmatmul.mubr.f32.gmra.mrb[0].mxu0 %v1559
    %v1874 = vpop.f32.mrb[0].mxu0
    %v1875 = vadd.f32 %v1663, %v1874
    %v1876 = vpop.f32.mrb[0].mxu0
    %1877 = vmatprep.mubr.f32.mxu0 %v1562
    %1878 = vmatmul.mubr.f32.gmra.mrb[0].mxu0 %v1561
    %v1879 = vpop.f32.mrb[0].mxu0
    %v1880 = vadd.f32 %v1667, %v1879
    %v1881 = vpop.f32.mrb[0].mxu0
    %1882 = vmatprep.mubr.f32.mxu0 %v1564
    %1883 = vmatmul.mubr.f32.gmra.mrb[0].mxu0 %v1563
    %v1884 = vpop.f32.mrb[0].mxu0
    %v1885 = vadd.f32 %v1671, %v1884
    %v1886 = vpop.f32.mrb[0].mxu0
    %1887 = vmatprep.mubr.f32.mxu0 %v1566
    %1888 = vmatmul.mubr.f32.gmra.mrb[0].mxu0 %v1565
    %v1889 = vpop.f32.mrb[0].mxu0
    %v1890 = vadd.f32 %v1675, %v1889
    %v1891 = vpop.f32.mrb[0].mxu0
    %1892 = vmatprep.mubr.f32.mxu0 %v1568
    %1893 = vmatmul.mubr.f32.gmra.mrb[0].mxu0 %v1567
    %v1894 = vpop.f32.mrb[0].mxu0
    %v1895 = vadd.f32 %v1679, %v1894
    %v1896 = vpop.f32.mrb[0].mxu0
    %1897 = vmatprep.mubr.f32.mxu0 %v1570
    %1898 = vmatmul.mubr.f32.gmra.mrb[0].mxu0 %v1569
    %v1899 = vpop.f32.mrb[0].mxu0
    %v1900 = vadd.f32 %v1683, %v1899
    %v1901 = vpop.f32.mrb[0].mxu0
    %1902 = vmatprep.mubr.f32.mxu0 %v1572
    %1903 = vmatmul.mubr.f32.gmra.mrb[0].mxu0 %v1571
    %v1904 = vpop.f32.mrb[0].mxu0
    %v1905 = vadd.f32 %v1687, %v1904
    %v1906 = vpop.f32.mrb[0].mxu0
    %1907 = vmatprep.mubr.f32.mxu0 %v1574
    %1908 = vmatmul.mubr.f32.gmra.mrb[0].mxu0 %v1573
    %v1909 = vpop.f32.mrb[0].mxu0
    %v1910 = vadd.f32 %v1691, %v1909
    %v1911 = vpop.f32.mrb[0].mxu0
    %1912 = vmatprep.mubr.f32.mxu0 %v1576
    %1913 = vmatmul.mubr.f32.gmra.mrb[0].mxu0 %v1575
    %v1914 = vpop.f32.mrb[0].mxu0
    %v1915 = vadd.f32 %v1695, %v1914
    %v1916 = vpop.f32.mrb[0].mxu0
    %1917 = vmatprep.mubr.f32.mxu0 %v1578
    %1918 = vmatmul.mubr.f32.gmra.mrb[0].mxu0 %v1577
    %v1919 = vpop.f32.mrb[0].mxu0
    %v1920 = vadd.f32 %v1699, %v1919
    %v1921 = vpop.f32.mrb[0].mxu0
    %1922 = vmatprep.mubr.f32.mxu0 %v1580
    %1923 = vmatmul.mubr.f32.gmra.mrb[0].mxu0 %v1579
    %v1924 = vpop.f32.mrb[0].mxu0
    %v1925 = vadd.f32 %v1703, %v1924
    %v1926 = vpop.f32.mrb[0].mxu0
    %1927 = vmatprep.mubr.f32.mxu0 %v1582
    %1928 = vmatmul.mubr.f32.gmra.mrb[0].mxu0 %v1581
    %v1929 = vpop.f32.mrb[0].mxu0
    %v1930 = vadd.f32 %v1707, %v1929
    %v1931 = vpop.f32.mrb[0].mxu0
    %1932 = vmatprep.mubr.f32.mxu0 %v1584
    %1933 = vmatmul.mubr.f32.gmra.mrb[0].mxu0 %v1583
    %v1934 = vpop.f32.mrb[0].mxu0
    %v1935 = vadd.f32 %v1711, %v1934
    %v1936 = vpop.f32.mrb[0].mxu0
    %1937 = vdwg.mxu0
    %v1938 = vmax.f32 %v1780, 0.0
    %v1939 = vmax.f32 %v1785, 0.0
    %v1940 = vmax.f32 %v1790, 0.0
    %v1941 = vmax.f32 %v1795, 0.0
    %v1942 = vmax.f32 %v1800, 0.0
    %v1943 = vmax.f32 %v1805, 0.0
    %v1944 = vmax.f32 %v1810, 0.0
    %v1945 = vmax.f32 %v1815, 0.0
    %v1946 = vmax.f32 %v1820, 0.0
    %v1947 = vmax.f32 %v1825, 0.0
    %v1948 = vmax.f32 %v1830, 0.0
    %v1949 = vmax.f32 %v1835, 0.0
    %v1950 = vmax.f32 %v1840, 0.0
    %v1951 = vmax.f32 %v1845, 0.0
    %v1952 = vmax.f32 %v1850, 0.0
    %v1953 = vmax.f32 %v1855, 0.0
    %v1954 = vmax.f32 %v1860, 0.0
    %v1955 = vmax.f32 %v1865, 0.0
    %v1956 = vmax.f32 %v1870, 0.0
    %v1957 = vmax.f32 %v1875, 0.0
    %v1958 = vmax.f32 %v1880, 0.0
    %v1959 = vmax.f32 %v1885, 0.0
    %v1960 = vmax.f32 %v1890, 0.0
    %v1961 = vmax.f32 %v1895, 0.0
    %v1962 = vmax.f32 %v1900, 0.0
    %v1963 = vmax.f32 %v1905, 0.0
    %v1964 = vmax.f32 %v1910, 0.0
    %v1965 = vmax.f32 %v1915, 0.0
    %v1966 = vmax.f32 %v1920, 0.0
    %v1967 = vmax.f32 %v1925, 0.0
    %v1968 = vmax.f32 %v1930, 0.0
    %v1969 = vmax.f32 %v1935, 0.0
    %v1970 = vmul.f32 %v1938, %v1954
    %v1971 = vmul.f32 %v1939, %v1955
    %v1972 = vmul.f32 %v1940, %v1956
    %v1973 = vmul.f32 %v1941, %v1957
    %v1974 = vmul.f32 %v1942, %v1958
    %v1975 = vmul.f32 %v1943, %v1959
    %v1976 = vmul.f32 %v1944, %v1960
    %v1977 = vmul.f32 %v1945, %v1961
    %v1978 = vmul.f32 %v1946, %v1962
    %v1979 = vmul.f32 %v1947, %v1963
    %v1980 = vmul.f32 %v1948, %v1964
    %v1981 = vmul.f32 %v1949, %v1965
    %v1982 = vmul.f32 %v1950, %v1966
    %v1983 = vmul.f32 %v1951, %v1967
    %v1984 = vmul.f32 %v1952, %v1968
    %v1985 = vmul.f32 %v1953, %v1969
    %v1986 = vadd.f32 %v1970, %v1971
    %v1987 = vadd.f32 %v1986, %v1972
    %v1988 = vadd.f32 %v1987, %v1973
    %v1989 = vadd.f32 %v1988, %v1974
    %v1990 = vadd.f32 %v1989, %v1975
    %v1991 = vadd.f32 %v1990, %v1976
    %v1992 = vadd.f32 %v1991, %v1977
    %v1993 = vadd.f32 %v1992, %v1978
    %v1994 = vadd.f32 %v1993, %v1979
    %v1995 = vadd.f32 %v1994, %v1980
    %v1996 = vadd.f32 %v1995, %v1981
    %v1997 = vadd.f32 %v1996, %v1982
    %v1998 = vadd.f32 %v1997, %v1983
    %v1999 = vadd.f32 %v1998, %v1984
    %v2000 = vadd.f32 %v1999, %v1985
    %v2001 = vrot.slane %v2000, 4
    %v2002 = vadd.f32 %v2000, %v2001
    %v2003 = vrot.slane %v2002, 2
    %v2004 = vadd.f32 %v2002, %v2003
    %v2005 = vrot.slane %v2004, 1
    %v2006 = vadd.f32 %v2004, %v2005
    %2007 = vst [vmem:[%s6] sm:$0x1] %v2006
    // Predicated region
    $region30: #{dnn_forward.1} parent=1 // pred_check
      _
    $region31: #{dnn_forward.1} parent=1 // pred_check_branch
      %2009 = sbr.rel (0) target = $region33
    $region32: #{dnn_forward.1} parent=1 // pred_region
      _
    $region33: #{dnn_forward.1} parent=1 // pred_fallthru
      _
    // Predicated region
    $region34: #{dnn_forward.1} parent=1 // pred_check
      _
    $region35: #{dnn_forward.1} parent=1 // pred_check_branch
      %2011 = sbr.rel (0) target = $region37
    $region36: #{dnn_forward.1} parent=1 // pred_region
      _
    $region37: #{dnn_forward.1} parent=1 // pred_fallthru
      _
    %2012 = vsyncpa [#allocation3], 1

</llo_original>
